<compile_context>
chip_gen: v7x
topology: tpu7x:2x2x1
jax: 0.10.0
libtpu: 0.0.40
codegen_flags: <defaults>
</compile_context>

<pallas_src>
import jax
import jax.numpy as jnp
from jax.experimental import pallas as pl
from jax.experimental.pallas import tpu as pltpu


def mlp_kernel(x_ref, w1_ref, b1_ref, w2_ref, b2_ref, w3_ref, b3_ref, o_ref):
    # x_ref : (1, TB) f32    batch tile on lanes
    # w1_ref: (H, 1) f32     layer1.weight            b1_ref: (H, 1) f32
    # w2_ref: (H, H) bf16    layer2.weight (out, in)  b2_ref: (H, 1) f32
    # w3_ref: (H, 1) f32     layer3.weight.T
    # b3_ref: (1,)   f32     layer3.bias, SMEM scalar
    # o_ref : (1, TB) f32
    x = x_ref[...]                                              # (1, TB)

    # layer1 + ReLU: pure VPU broadcast (no K=1 MXU matmul), kept in f32.
    h1 = jnp.maximum(w1_ref[...] * x + b1_ref[...], 0.0)        # (H, TB)

    # layer2 + ReLU: native bf16 MXU matmul with f32 accumulation.
    h2 = jnp.dot(w2_ref[...], h1.astype(jnp.bfloat16),
                 preferred_element_type=jnp.float32) + b2_ref[...]
    h2 = jnp.maximum(h2, 0.0)                                   # (H, TB)

    # layer3: VPU multiply + XLU sublane reduce, lane-dense output.
    out = jnp.sum(w3_ref[...] * h2, axis=0, keepdims=True) + b3_ref[0]
    o_ref[...] = out.astype(o_ref.dtype)                        # (1, TB)


def _call_mlp(xt, w1, b1, w2, b2, w3, b3, *, tb, single_buffer_weights):
    B = xt.shape[1]
    H = w2.shape[0]
    n_blk = pl.cdiv(B, tb)

    if single_buffer_weights:
        # Resident weights: constant index_map -> one VMEM copy is enough.
        def wspec(shape):
            return pl.BlockSpec(shape, lambda i: (0, 0),
                                pipeline_mode=pl.Buffered(1))
    else:
        def wspec(shape):
            return pl.BlockSpec(shape, lambda i: (0, 0))

    return pl.pallas_call(
        mlp_kernel,
        out_shape=jax.ShapeDtypeStruct((1, B), jnp.float32),
        grid=(n_blk,),
        in_specs=[
            pl.BlockSpec((1, tb), lambda i: (0, i)),            # x tile
            wspec((H, 1)),                                      # w1 (resident)
            wspec((H, 1)),                                      # b1
            wspec((H, H)),                                      # w2 (bf16)
            wspec((H, 1)),                                      # b2
            wspec((H, 1)),                                      # w3
            pl.BlockSpec(memory_space=pltpu.MemorySpace.SMEM),  # b3 (1,) scalar
        ],
        out_specs=pl.BlockSpec((1, tb), lambda i: (0, i)),
        compiler_params=pltpu.CompilerParams(
            dimension_semantics=("parallel",)),                 # megacore (v7x)
    )(xt, w1, b1, w2, b2, w3, b3)


def mlp_forward(x, params, *, tb=2048):
    """x: (B, 1) float32 -> (B, 1) float32.

    tb: lane-dense batch tile (multiple of 128).  Keep B/tb >= 2 if you want
    the batch axis to split across v7x's two TensorCores; on v5e/v6e a single
    big tile is strictly better.
    # TODO(synk): if I/O volume ever matters, present batch as an (8, tb/8)
    # slab instead of (1, tb) for 8x denser x/out vregs and unmasked stores.
    """
    w1, b1, w2, b2, w3, b3 = (params["w1"], params["b1"], params["w2"],
                              params["b2"], params["w3"], params["b3"])
    xt = x.T                                                    # (1, B)
    try:
        out_t = _call_mlp(xt, w1, b1, w2, b2, w3, b3,
                          tb=tb, single_buffer_weights=True)
    except Exception:
        # Fallback for jax versions without pipeline_mode on top-level specs;
        # identical kernel, default (double-buffered) weight specs.
        out_t = _call_mlp(xt, w1, b1, w2, b2, w3, b3,
                          tb=tb, single_buffer_weights=False)
    return out_t.T                                              # (B, 1)


def init_params(num, key):
    """Deterministic init mimicking nn.Linear (uniform +/- 1/sqrt(fan_in))."""
    k = jax.random.split(key, 6)

    def u(key, shape, fan_in, dtype=jnp.float32):
        bound = float(fan_in) ** -0.5
        v = jax.random.uniform(key, shape, jnp.float32, -bound, bound)
        return v.astype(dtype)

    return {
        "w1": u(k[0], (num, 1), 1),                   # layer1.weight (out, 1)
        "b1": u(k[1], (num, 1), 1),                   # layer1.bias column
        "w2": u(k[2], (num, num), num, jnp.bfloat16),  # layer2.weight, bf16 (MXU)
        "b2": u(k[3], (num, 1), num),                 # layer2.bias column
        "w3": u(k[4], (num, 1), num),                 # layer3.weight.T
        "b3": u(k[5], (1,), num),                     # layer3.bias scalar (1,)
    }


def mlp_reference(x, params):
    """Row-major (batch, feature) reference matching the PyTorch module
    (uses the same bf16-stored w2, upcast to f32, HIGHEST precision)."""
    hi = jax.lax.Precision.HIGHEST
    w2 = params["w2"].astype(jnp.float32)
    h1 = jnp.maximum(x * params["w1"][:, 0] + params["b1"][:, 0], 0.0)   # (B,H)
    h2 = jnp.maximum(
        jnp.dot(h1, w2.T, precision=hi) + params["b2"][:, 0], 0.0)
    out = jnp.dot(h2, params["w3"], precision=hi) + params["b3"][0]      # (B,1)
    return out


if __name__ == "__main__":
    key = jax.random.PRNGKey(0)
    k_x, k_p = jax.random.split(key)

    num = 32       # hidden width (the `num` ctor arg)
    batch = 5000   # 3 grid steps at tb=2048: >=2 "parallel" steps for v7x
                   # megacore AND a ragged final block (no wrapper pad/slice)

    x = jax.random.normal(k_x, (batch, 1), jnp.float32)
    params = init_params(num, k_p)

    out = mlp_forward(x, params, tb=2048)
    out = jax.block_until_ready(out)

    ref = mlp_reference(x, params)
    assert out.shape == (batch, 1)
    # Tolerance is looser than pure-f32 because layer2 runs with bf16 MXU
    # operands (f32 accumulate); observed error is a few 1e-3 at H=32.
    assert jnp.allclose(out, ref, atol=1e-2, rtol=1e-2), (
        float(jnp.max(jnp.abs(out - ref))))

    print("KERNEL_OK")
</pallas_src>

<mosaic_0001>
module attributes {stable_mosaic.version = 11 : i64} {
  func.func @mlp_kernel(%arg0: i32, %arg1: memref<1x2048xf32, #tpu.memory_space<vmem>>, %arg2: memref<32x1xf32, #tpu.memory_space<vmem>>, %arg3: memref<32x1xf32, #tpu.memory_space<vmem>>, %arg4: memref<32x32xbf16, #tpu.memory_space<vmem>>, %arg5: memref<32x1xf32, #tpu.memory_space<vmem>>, %arg6: memref<32x1xf32, #tpu.memory_space<vmem>>, %arg7: memref<1xf32, #tpu.memory_space<smem>>, %arg8: memref<1x2048xf32, #tpu.memory_space<vmem>>) attributes {dimension_semantics = [#tpu.dimension_semantics<parallel>], iteration_bounds = array<i64: 3>, scalar_prefetch = 0 : i64, scratch_operands = 0 : i64, tpu.core_type = #tpu.core_type<tc>, window_params = [{transform_indices = @transform_0, window_bounds = array<i64: 1, 2048>}, {pipeline_mode = #tpu.pipeline_mode<synchronous>, transform_indices = @transform_1, window_bounds = array<i64: 32, 1>}, {pipeline_mode = #tpu.pipeline_mode<synchronous>, transform_indices = @transform_2, window_bounds = array<i64: 32, 1>}, {pipeline_mode = #tpu.pipeline_mode<synchronous>, transform_indices = @transform_3, window_bounds = array<i64: 32, 32>}, {pipeline_mode = #tpu.pipeline_mode<synchronous>, transform_indices = @transform_4, window_bounds = array<i64: 32, 1>}, {pipeline_mode = #tpu.pipeline_mode<synchronous>, transform_indices = @transform_5, window_bounds = array<i64: 32, 1>}, {transform_indices = @transform_6, window_bounds = array<i64: 1>}, {transform_indices = @transform_7, window_bounds = array<i64: 1, 2048>}]} {
    %c0 = arith.constant 0 : index
    %c0_0 = arith.constant 0 : index
    %0 = vector.load %arg1[%c0, %c0_0] : memref<1x2048xf32, #tpu.memory_space<vmem>>, vector<1x2048xf32>
    %c0_1 = arith.constant 0 : index
    %c0_2 = arith.constant 0 : index
    %1 = vector.load %arg2[%c0_1, %c0_2] : memref<32x1xf32, #tpu.memory_space<vmem>>, vector<32x1xf32>
    %2 = vector.broadcast %1 : vector<32x1xf32> to vector<32x2048xf32>
    %3 = vector.broadcast %0 : vector<1x2048xf32> to vector<32x2048xf32>
    %4 = arith.mulf %2, %3 : vector<32x2048xf32>
    %c0_3 = arith.constant 0 : index
    %c0_4 = arith.constant 0 : index
    %5 = vector.load %arg3[%c0_3, %c0_4] : memref<32x1xf32, #tpu.memory_space<vmem>>, vector<32x1xf32>
    %6 = vector.broadcast %5 : vector<32x1xf32> to vector<32x2048xf32>
    %7 = arith.addf %4, %6 : vector<32x2048xf32>
    %cst = arith.constant 0.000000e+00 : f32
    %8 = vector.broadcast %cst : f32 to vector<32x2048xf32>
    %9 = arith.maximumf %7, %8 : vector<32x2048xf32>
    %c0_5 = arith.constant 0 : index
    %c0_6 = arith.constant 0 : index
    %10 = vector.load %arg4[%c0_5, %c0_6] : memref<32x32xbf16, #tpu.memory_space<vmem>>, vector<32x32xbf16>
    %11 = arith.truncf %9 : vector<32x2048xf32> to vector<32x2048xbf16>
    %cst_7 = arith.constant dense<0.000000e+00> : vector<32x2048xf32>
    %12 = tpu.matmul %10, %11, %cst_7 {dimension_numbers = #tpu.dot_dimension_numbers<[1], [0], [0], [1], [0, 0, 1, 1], [], []>} : vector<32x32xbf16>, vector<32x2048xbf16>, vector<32x2048xf32> -> vector<32x2048xf32>
    %c0_8 = arith.constant 0 : index
    %c0_9 = arith.constant 0 : index
    %13 = vector.load %arg5[%c0_8, %c0_9] : memref<32x1xf32, #tpu.memory_space<vmem>>, vector<32x1xf32>
    %14 = vector.broadcast %13 : vector<32x1xf32> to vector<32x2048xf32>
    %15 = arith.addf %12, %14 : vector<32x2048xf32>
    %cst_10 = arith.constant 0.000000e+00 : f32
    %16 = vector.broadcast %cst_10 : f32 to vector<32x2048xf32>
    %17 = arith.maximumf %15, %16 : vector<32x2048xf32>
    %c0_11 = arith.constant 0 : index
    %c0_12 = arith.constant 0 : index
    %18 = vector.load %arg6[%c0_11, %c0_12] : memref<32x1xf32, #tpu.memory_space<vmem>>, vector<32x1xf32>
    %19 = vector.broadcast %18 : vector<32x1xf32> to vector<32x2048xf32>
    %20 = arith.mulf %19, %17 : vector<32x2048xf32>
    %cst_13 = arith.constant dense<0.000000e+00> : vector<2048xf32>
    %21 = vector.multi_reduction <add>, %20, %cst_13 [0] : vector<32x2048xf32> to vector<2048xf32>
    %22 = vector.shape_cast %21 : vector<2048xf32> to vector<1x2048xf32>
    %c0_14 = arith.constant 0 : index
    %23 = memref.load %arg7[%c0_14] : memref<1xf32, #tpu.memory_space<smem>>
    %24 = vector.broadcast %23 : f32 to vector<1x2048xf32>
    %25 = arith.addf %22, %24 : vector<1x2048xf32>
    %c0_15 = arith.constant 0 : index
    %c0_16 = arith.constant 0 : index
    %26 = vector.load %arg8[%c0_15, %c0_16] : memref<1x2048xf32, #tpu.memory_space<vmem>>, vector<1x2048xf32>
    tpu.vector_store %arg8[%c0_15, %c0_16], %25 {strides = array<i32>} : memref<1x2048xf32, #tpu.memory_space<vmem>>, vector<1x2048xf32>,
    return
  }
  func.func @transform_0(%arg0: i32) -> (i32, i32) {
    %c0_i32 = arith.constant 0 : i32
    %c0_i32_0 = arith.constant 0 : i32
    return %c0_i32, %arg0 : i32, i32
  }
  func.func @transform_1(%arg0: i32) -> (i32, i32) {
    %c0_i32 = arith.constant 0 : i32
    %c0_i32_0 = arith.constant 0 : i32
    %c0_i32_1 = arith.constant 0 : i32
    return %c0_i32, %c0_i32_0 : i32, i32
  }
  func.func @transform_2(%arg0: i32) -> (i32, i32) {
    %c0_i32 = arith.constant 0 : i32
    %c0_i32_0 = arith.constant 0 : i32
    %c0_i32_1 = arith.constant 0 : i32
    return %c0_i32, %c0_i32_0 : i32, i32
  }
  func.func @transform_3(%arg0: i32) -> (i32, i32) {
    %c0_i32 = arith.constant 0 : i32
    %c0_i32_0 = arith.constant 0 : i32
    %c0_i32_1 = arith.constant 0 : i32
    return %c0_i32, %c0_i32_0 : i32, i32
  }
  func.func @transform_4(%arg0: i32) -> (i32, i32) {
    %c0_i32 = arith.constant 0 : i32
    %c0_i32_0 = arith.constant 0 : i32
    %c0_i32_1 = arith.constant 0 : i32
    return %c0_i32, %c0_i32_0 : i32, i32
  }
  func.func @transform_5(%arg0: i32) -> (i32, i32) {
    %c0_i32 = arith.constant 0 : i32
    %c0_i32_0 = arith.constant 0 : i32
    %c0_i32_1 = arith.constant 0 : i32
    return %c0_i32, %c0_i32_0 : i32, i32
  }
  func.func @transform_6(%arg0: i32) -> i32 {
    %c0_i32 = arith.constant 0 : i32
    %c0_i32_0 = arith.constant 0 : i32
    return %c0_i32 : i32
  }
  func.func @transform_7(%arg0: i32) -> (i32, i32) {
    %c0_i32 = arith.constant 0 : i32
    %c0_i32_0 = arith.constant 0 : i32
    return %c0_i32, %arg0 : i32, i32
  }
}

module attributes {stable_mosaic.version = 11 : i64} {
  func.func @mlp_kernel(%arg0: i32, %arg1: memref<1x2048xf32, #tpu.memory_space<vmem>>, %arg2: memref<32x1xf32, #tpu.memory_space<vmem>>, %arg3: memref<32x1xf32, #tpu.memory_space<vmem>>, %arg4: memref<32x32xbf16, #tpu.memory_space<vmem>>, %arg5: memref<32x1xf32, #tpu.memory_space<vmem>>, %arg6: memref<32x1xf32, #tpu.memory_space<vmem>>, %arg7: memref<1xf32, #tpu.memory_space<smem>>, %arg8: memref<1x2048xf32, #tpu.memory_space<vmem>>) attributes {dimension_semantics = [#tpu.dimension_semantics<parallel>], iteration_bounds = array<i64: 3>, scalar_prefetch = 0 : i64, scratch_operands = 0 : i64, tpu.core_type = #tpu.core_type<tc>, window_params = [{transform_indices = @transform_0, window_bounds = array<i64: 1, 2048>}, {pipeline_mode = #tpu.pipeline_mode<synchronous>, transform_indices = @transform_1, window_bounds = array<i64: 32, 1>}, {pipeline_mode = #tpu.pipeline_mode<synchronous>, transform_indices = @transform_2, window_bounds = array<i64: 32, 1>}, {pipeline_mode = #tpu.pipeline_mode<synchronous>, transform_indices = @transform_3, window_bounds = array<i64: 32, 32>}, {pipeline_mode = #tpu.pipeline_mode<synchronous>, transform_indices = @transform_4, window_bounds = array<i64: 32, 1>}, {pipeline_mode = #tpu.pipeline_mode<synchronous>, transform_indices = @transform_5, window_bounds = array<i64: 32, 1>}, {transform_indices = @transform_6, window_bounds = array<i64: 1>}, {transform_indices = @transform_7, window_bounds = array<i64: 1, 2048>}]} {
    %c0 = arith.constant 0 : index
    %c0_0 = arith.constant 0 : index
    %0 = vector.load %arg1[%c0, %c0_0] : memref<1x2048xf32, #tpu.memory_space<vmem>>, vector<1x2048xf32>
    %c0_1 = arith.constant 0 : index
    %c0_2 = arith.constant 0 : index
    %1 = vector.load %arg2[%c0_1, %c0_2] : memref<32x1xf32, #tpu.memory_space<vmem>>, vector<32x1xf32>
    %2 = vector.broadcast %1 : vector<32x1xf32> to vector<32x2048xf32>
    %3 = vector.broadcast %0 : vector<1x2048xf32> to vector<32x2048xf32>
    %4 = arith.mulf %2, %3 : vector<32x2048xf32>
    %c0_3 = arith.constant 0 : index
    %c0_4 = arith.constant 0 : index
    %5 = vector.load %arg3[%c0_3, %c0_4] : memref<32x1xf32, #tpu.memory_space<vmem>>, vector<32x1xf32>
    %6 = vector.broadcast %5 : vector<32x1xf32> to vector<32x2048xf32>
    %7 = arith.addf %4, %6 : vector<32x2048xf32>
    %cst = arith.constant 0.000000e+00 : f32
    %8 = vector.broadcast %cst : f32 to vector<32x2048xf32>
    %9 = arith.maximumf %7, %8 : vector<32x2048xf32>
    %c0_5 = arith.constant 0 : index
    %c0_6 = arith.constant 0 : index
    %10 = vector.load %arg4[%c0_5, %c0_6] : memref<32x32xbf16, #tpu.memory_space<vmem>>, vector<32x32xbf16>
    %11 = arith.truncf %9 : vector<32x2048xf32> to vector<32x2048xbf16>
    %cst_7 = arith.constant dense<0.000000e+00> : vector<32x2048xf32>
    %12 = tpu.matmul %10, %11, %cst_7 {dimension_numbers = #tpu.dot_dimension_numbers<[1], [0], [0], [1], [0, 0, 1, 1], [], []>} : vector<32x32xbf16>, vector<32x2048xbf16>, vector<32x2048xf32> -> vector<32x2048xf32>
    %c0_8 = arith.constant 0 : index
    %c0_9 = arith.constant 0 : index
    %13 = vector.load %arg5[%c0_8, %c0_9] : memref<32x1xf32, #tpu.memory_space<vmem>>, vector<32x1xf32>
    %14 = vector.broadcast %13 : vector<32x1xf32> to vector<32x2048xf32>
    %15 = arith.addf %12, %14 : vector<32x2048xf32>
    %cst_10 = arith.constant 0.000000e+00 : f32
    %16 = vector.broadcast %cst_10 : f32 to vector<32x2048xf32>
    %17 = arith.maximumf %15, %16 : vector<32x2048xf32>
    %c0_11 = arith.constant 0 : index
    %c0_12 = arith.constant 0 : index
    %18 = vector.load %arg6[%c0_11, %c0_12] : memref<32x1xf32, #tpu.memory_space<vmem>>, vector<32x1xf32>
    %19 = vector.broadcast %18 : vector<32x1xf32> to vector<32x2048xf32>
    %20 = arith.mulf %19, %17 : vector<32x2048xf32>
    %cst_13 = arith.constant dense<0.000000e+00> : vector<2048xf32>
    %21 = vector.multi_reduction <add>, %20, %cst_13 [0] : vector<32x2048xf32> to vector<2048xf32>
    %22 = vector.shape_cast %21 : vector<2048xf32> to vector<1x2048xf32>
    %c0_14 = arith.constant 0 : index
    %23 = memref.load %arg7[%c0_14] : memref<1xf32, #tpu.memory_space<smem>>
    %24 = vector.broadcast %23 : f32 to vector<1x2048xf32>
    %25 = arith.addf %22, %24 : vector<1x2048xf32>
    %c0_15 = arith.constant 0 : index
    %c0_16 = arith.constant 0 : index
    %26 = vector.load %arg8[%c0_15, %c0_16] : memref<1x2048xf32, #tpu.memory_space<vmem>>, vector<1x2048xf32>
    tpu.vector_store %arg8[%c0_15, %c0_16], %25 {strides = array<i32>} : memref<1x2048xf32, #tpu.memory_space<vmem>>, vector<1x2048xf32>,
    return
  }
  func.func @transform_0(%arg0: i32) -> (i32, i32) {
    %c0_i32 = arith.constant 0 : i32
    %c0_i32_0 = arith.constant 0 : i32
    return %c0_i32, %arg0 : i32, i32
  }
  func.func @transform_1(%arg0: i32) -> (i32, i32) {
    %c0_i32 = arith.constant 0 : i32
    %c0_i32_0 = arith.constant 0 : i32
    %c0_i32_1 = arith.constant 0 : i32
    return %c0_i32, %c0_i32_0 : i32, i32
  }
  func.func @transform_2(%arg0: i32) -> (i32, i32) {
    %c0_i32 = arith.constant 0 : i32
    %c0_i32_0 = arith.constant 0 : i32
    %c0_i32_1 = arith.constant 0 : i32
    return %c0_i32, %c0_i32_0 : i32, i32
  }
  func.func @transform_3(%arg0: i32) -> (i32, i32) {
    %c0_i32 = arith.constant 0 : i32
    %c0_i32_0 = arith.constant 0 : i32
    %c0_i32_1 = arith.constant 0 : i32
    return %c0_i32, %c0_i32_0 : i32, i32
  }
  func.func @transform_4(%arg0: i32) -> (i32, i32) {
    %c0_i32 = arith.constant 0 : i32
    %c0_i32_0 = arith.constant 0 : i32
    %c0_i32_1 = arith.constant 0 : i32
    return %c0_i32, %c0_i32_0 : i32, i32
  }
  func.func @transform_5(%arg0: i32) -> (i32, i32) {
    %c0_i32 = arith.constant 0 : i32
    %c0_i32_0 = arith.constant 0 : i32
    %c0_i32_1 = arith.constant 0 : i32
    return %c0_i32, %c0_i32_0 : i32, i32
  }
  func.func @transform_6(%arg0: i32) -> i32 {
    %c0_i32 = arith.constant 0 : i32
    %c0_i32_0 = arith.constant 0 : i32
    return %c0_i32 : i32
  }
  func.func @transform_7(%arg0: i32) -> (i32, i32) {
    %c0_i32 = arith.constant 0 : i32
    %c0_i32_0 = arith.constant 0 : i32
    return %c0_i32, %arg0 : i32, i32
  }
}

</mosaic_0001>

<llo_original>
// kernel: tpu_custom_call.1
$region0: #{tpu_custom_call.1}
  #allocation0 [shape = 'u32[]', space=smem, size = 0x4, offset = 0x4, fixed_abs, tag = 'smem constant byte address 0x4 - core index']
  #allocation1 [shape = 'u32[144,128]{1,0:T(1,128)}', space=vmem, size = 0x12000, scoped, tag = 'internal scratch']
  #allocation2 [shape = 'f32[1]{0:T(128)S(6)}', space=smem, size = 0x200, scoped, tag = 'scoped memory for tpu_custom_call.1']
  %s0 = inlined_call_operand.vmem [shape: f32[1,5000], index: 0, kind: input, shape index: {}]
  %s1 = inlined_call_operand.vmem [shape: f32[32,1], index: 1, kind: input, shape index: {}]
  %s2 = inlined_call_operand.vmem [shape: f32[32,1], index: 2, kind: input, shape index: {}]
  %s3 = inlined_call_operand.vmem [shape: bf16[32,32], index: 3, kind: input, shape index: {}]
  %s4 = inlined_call_operand.vmem [shape: f32[32,1], index: 4, kind: input, shape index: {}]
  %s5 = inlined_call_operand.vmem [shape: f32[32,1], index: 5, kind: input, shape index: {}]
  %s6 = inlined_call_operand.<no memory space> [shape: f32[1], index: 6, kind: input, shape index: {}]
  %s7 = inlined_call_operand.hbm [shape: f32[1,5000], index: 7, kind: output, shape index: {}]
  %s8 = sld [smem:[#allocation0]]
  $region61: #{tpu_custom_call.1} parent=0
    _
  %s10 = ssub.s32 1, %s8
  %s11 = scalar_select 0, %s10, %s8
  %12 = sst [smem:[#allocation2]] %s6
  $region1: #{tpu_custom_call.1} parent=0
    #allocation3 [shape = 'u8[16384]{0}', space=vmem, size = 0x4000, scoped, tag = 'output window, operand 0']
    #allocation4 [shape = 's32[2]{0}', space=sflag, size = 0x8, scoped, tag = 'scoped memory for tpu_custom_call.1']
    %13 = vsyncpa [#allocation4], 0
    %s14 = scalar_lea.sflag [#allocation4], 1
    %15 = vsyncpa %s14, 0
    loop: start=0, step=1, limit=5
    $region2: #{tpu_custom_call.1} parent=1 // loop_pre_header
      _
    $region3: #{tpu_custom_call.1} parent=1 // loop_header
      %s17 = sphi 0, %s21
      %p18 = scmp.ge.s32.totalorder %s17, 5
      %s27 = sphi 0, %s29
      %s30 = sphi 0, %s27
      %s31 = sphi 0, %s30
      %s47 = sphi 0, %s31
      %s51 = sphi 0, %s51
      %s53 = sphi 0, %s51
      %s54 = sphi 0, %s53
      %s68 = sphi 0, %s54
      %s72 = sphi 0, %s72
      %s74 = sphi 0, %s72
      %s75 = sphi 0, %s74
      %s89 = sphi 0, %s75
      %s93 = sphi 0, %s93
      %s95 = sphi 0, %s93
      %s96 = sphi 0, %s95
      %s110 = sphi 0, %s96
      %s114 = sphi 0, %s114
      %s116 = sphi 0, %s114
      %s117 = sphi 0, %s116
      %s131 = sphi 0, %s117
      %s135 = sphi 0, %s135
      %s137 = sphi 0, %s135
      %s138 = sphi 0, %s137
      %s152 = sphi 0, %s138
      %s156 = sphi 0, %s156
      %s158 = sphi 0, %s156
      %s159 = sphi 0, %s158
      %s173 = sphi 0, %s159
      %s179 = sphi 0, %s181
      %s182 = sphi 0, %s179
      %s183 = sphi 0, %s182
      %s199 = sphi 0, %s183
    $region4: #{tpu_custom_call.1} parent=1 // loop_header_branch
      %20 = sbr.rel (%p18) target = $region8
    $region5: #{tpu_custom_call.1} parent=1 // loop_body
      %s22 = ssub.s32 %s17, 1
      %s23 = ssub.s32 %s17, 2
      %s24 = sadd.s32 %s17, 1
      %s25 = ssub.s32 %s17, %s24
      %p26 = scmp.eq.s32.totalorder %s25, 0
      %s28 = sadd.s32 %s27, 1
      %s29 = scalar_select %p26, %s27, %s28
      %p32 = pneg %p26
      %p33 = scmp.eq.s32.totalorder %s17, 2
      %p34 = por %p32, %p33
      %p35 = scmp.ne.s32.totalorder %s27, %s30
      %p36 = scmp.eq.s32.totalorder %s17, 0
      %p37 = por %p35, %p36
      %p38 = scmp.ne.s32.totalorder %s27, %s30
      %p39 = scmp.eq.s32.totalorder %s22, 2
      %p40 = por %p38, %p39
      %p41 = scmp.ne.s32.totalorder %s30, %s31
      %p42 = scmp.eq.s32.totalorder %s22, 0
      %p43 = por %p41, %p42
      %p44 = scmp.ne.s32.totalorder %s30, %s31
      %p45 = scmp.eq.s32.totalorder %s23, 2
      %p46 = por %p44, %p45
      %p48 = scmp.ne.s32.totalorder %s31, %s47
      %p49 = scmp.eq.s32.totalorder %s23, 0
      %p50 = por %p48, %p49
      %s52 = sadd.s32 %s51, 1
      %p55 = scmp.eq.s32.totalorder %s17, 2
      %p56 = scmp.ne.s32.totalorder %s51, %s53
      %p57 = scmp.eq.s32.totalorder %s17, 0
      %p58 = por %p56, %p57
      %p59 = scmp.ne.s32.totalorder %s51, %s53
      %p60 = scmp.eq.s32.totalorder %s22, 2
      %p61 = por %p59, %p60
      %p62 = scmp.ne.s32.totalorder %s53, %s54
      %p63 = scmp.eq.s32.totalorder %s22, 0
      %p64 = por %p62, %p63
      %p65 = scmp.ne.s32.totalorder %s53, %s54
      %p66 = scmp.eq.s32.totalorder %s23, 2
      %p67 = por %p65, %p66
      %p69 = scmp.ne.s32.totalorder %s54, %s68
      %p70 = scmp.eq.s32.totalorder %s23, 0
      %p71 = por %p69, %p70
      %s73 = sadd.s32 %s72, 1
      %p76 = scmp.eq.s32.totalorder %s17, 2
      %p77 = scmp.ne.s32.totalorder %s72, %s74
      %p78 = scmp.eq.s32.totalorder %s17, 0
      %p79 = por %p77, %p78
      %p80 = scmp.ne.s32.totalorder %s72, %s74
      %p81 = scmp.eq.s32.totalorder %s22, 2
      %p82 = por %p80, %p81
      %p83 = scmp.ne.s32.totalorder %s74, %s75
      %p84 = scmp.eq.s32.totalorder %s22, 0
      %p85 = por %p83, %p84
      %p86 = scmp.ne.s32.totalorder %s74, %s75
      %p87 = scmp.eq.s32.totalorder %s23, 2
      %p88 = por %p86, %p87
      %p90 = scmp.ne.s32.totalorder %s75, %s89
      %p91 = scmp.eq.s32.totalorder %s23, 0
      %p92 = por %p90, %p91
      %s94 = sadd.s32 %s93, 1
      %p97 = scmp.eq.s32.totalorder %s17, 2
      %p98 = scmp.ne.s32.totalorder %s93, %s95
      %p99 = scmp.eq.s32.totalorder %s17, 0
      %p100 = por %p98, %p99
      %p101 = scmp.ne.s32.totalorder %s93, %s95
      %p102 = scmp.eq.s32.totalorder %s22, 2
      %p103 = por %p101, %p102
      %p104 = scmp.ne.s32.totalorder %s95, %s96
      %p105 = scmp.eq.s32.totalorder %s22, 0
      %p106 = por %p104, %p105
      %p107 = scmp.ne.s32.totalorder %s95, %s96
      %p108 = scmp.eq.s32.totalorder %s23, 2
      %p109 = por %p107, %p108
      %p111 = scmp.ne.s32.totalorder %s96, %s110
      %p112 = scmp.eq.s32.totalorder %s23, 0
      %p113 = por %p111, %p112
      %s115 = sadd.s32 %s114, 1
      %p118 = scmp.eq.s32.totalorder %s17, 2
      %p119 = scmp.ne.s32.totalorder %s114, %s116
      %p120 = scmp.eq.s32.totalorder %s17, 0
      %p121 = por %p119, %p120
      %p122 = scmp.ne.s32.totalorder %s114, %s116
      %p123 = scmp.eq.s32.totalorder %s22, 2
      %p124 = por %p122, %p123
      %p125 = scmp.ne.s32.totalorder %s116, %s117
      %p126 = scmp.eq.s32.totalorder %s22, 0
      %p127 = por %p125, %p126
      %p128 = scmp.ne.s32.totalorder %s116, %s117
      %p129 = scmp.eq.s32.totalorder %s23, 2
      %p130 = por %p128, %p129
      %p132 = scmp.ne.s32.totalorder %s117, %s131
      %p133 = scmp.eq.s32.totalorder %s23, 0
      %p134 = por %p132, %p133
      %s136 = sadd.s32 %s135, 1
      %p139 = scmp.eq.s32.totalorder %s17, 2
      %p140 = scmp.ne.s32.totalorder %s135, %s137
      %p141 = scmp.eq.s32.totalorder %s17, 0
      %p142 = por %p140, %p141
      %p143 = scmp.ne.s32.totalorder %s135, %s137
      %p144 = scmp.eq.s32.totalorder %s22, 2
      %p145 = por %p143, %p144
      %p146 = scmp.ne.s32.totalorder %s137, %s138
      %p147 = scmp.eq.s32.totalorder %s22, 0
      %p148 = por %p146, %p147
      %p149 = scmp.ne.s32.totalorder %s137, %s138
      %p150 = scmp.eq.s32.totalorder %s23, 2
      %p151 = por %p149, %p150
      %p153 = scmp.ne.s32.totalorder %s138, %s152
      %p154 = scmp.eq.s32.totalorder %s23, 0
      %p155 = por %p153, %p154
      %s157 = sadd.s32 %s156, 1
      %p160 = scmp.eq.s32.totalorder %s17, 2
      %p161 = scmp.ne.s32.totalorder %s156, %s158
      %p162 = scmp.eq.s32.totalorder %s17, 0
      %p163 = por %p161, %p162
      %p164 = scmp.ne.s32.totalorder %s156, %s158
      %p165 = scmp.eq.s32.totalorder %s22, 2
      %p166 = por %p164, %p165
      %p167 = scmp.ne.s32.totalorder %s158, %s159
      %p168 = scmp.eq.s32.totalorder %s22, 0
      %p169 = por %p167, %p168
      %p170 = scmp.ne.s32.totalorder %s158, %s159
      %p171 = scmp.eq.s32.totalorder %s23, 2
      %p172 = por %p170, %p171
      %p174 = scmp.ne.s32.totalorder %s159, %s173
      %p175 = scmp.eq.s32.totalorder %s23, 0
      %p176 = por %p174, %p175
      %s177 = ssub.s32 %s17, %s24
      %p178 = scmp.eq.s32.totalorder %s177, 0
      %s180 = sadd.s32 %s179, 1
      %s181 = scalar_select %p178, %s179, %s180
      %p184 = pneg %p178
      %p185 = scmp.eq.s32.totalorder %s17, 2
      %p186 = por %p184, %p185
      %p187 = scmp.ne.s32.totalorder %s179, %s182
      %p188 = scmp.eq.s32.totalorder %s17, 0
      %p189 = por %p187, %p188
      %p190 = scmp.ne.s32.totalorder %s179, %s182
      %p191 = scmp.eq.s32.totalorder %s22, 2
      %p192 = por %p190, %p191
      %p193 = scmp.ne.s32.totalorder %s182, %s183
      %p194 = scmp.eq.s32.totalorder %s22, 0
      %p195 = por %p193, %p194
      %p196 = scmp.ne.s32.totalorder %s182, %s183
      %p197 = scmp.eq.s32.totalorder %s23, 2
      %p198 = por %p196, %p197
      %p200 = scmp.ne.s32.totalorder %s183, %s199
      %p201 = scmp.eq.s32.totalorder %s23, 0
      %p202 = por %p200, %p201
      %p203 = scmp.le.s32.totalorder 1, %s17
      %p204 = scmp.lt.s32.totalorder %s17, 4
      %p205 = pnand %p203, %p204
      %p206 = pneg %p205
      // Predicated region
      $region9: #{tpu_custom_call.1} parent=5 // pred_check
        _
      $region10: #{tpu_custom_call.1} parent=5 // pred_check_branch
        %208 = sbr.rel (%p205) target = $region12
      $region11: #{tpu_custom_call.1} parent=5 // pred_region
        %s209 = ssub.s32 %s17, 1
        // Predicated region
        $region13: #{tpu_custom_call.1} parent=11 // pred_check
          %p210 = pneg %p64
        $region14: #{tpu_custom_call.1} parent=11 // pred_check_branch
          %212 = sbr.rel (%p210) target = $region16
        $region15: #{tpu_custom_call.1} parent=11 // pred_region
          _
        $region16: #{tpu_custom_call.1} parent=11 // pred_fallthru
          _
        // Predicated region
        $region17: #{tpu_custom_call.1} parent=11 // pred_check
          %p213 = pneg %p85
        $region18: #{tpu_custom_call.1} parent=11 // pred_check_branch
          %215 = sbr.rel (%p213) target = $region20
        $region19: #{tpu_custom_call.1} parent=11 // pred_region
          _
        $region20: #{tpu_custom_call.1} parent=11 // pred_fallthru
          _
        // Predicated region
        $region21: #{tpu_custom_call.1} parent=11 // pred_check
          %p216 = pneg %p106
        $region22: #{tpu_custom_call.1} parent=11 // pred_check_branch
          %218 = sbr.rel (%p216) target = $region24
        $region23: #{tpu_custom_call.1} parent=11 // pred_region
          _
        $region24: #{tpu_custom_call.1} parent=11 // pred_fallthru
          _
        // Predicated region
        $region25: #{tpu_custom_call.1} parent=11 // pred_check
          %p219 = pneg %p127
        $region26: #{tpu_custom_call.1} parent=11 // pred_check_branch
          %221 = sbr.rel (%p219) target = $region28
        $region27: #{tpu_custom_call.1} parent=11 // pred_region
          _
        $region28: #{tpu_custom_call.1} parent=11 // pred_fallthru
          _
        // Predicated region
        $region29: #{tpu_custom_call.1} parent=11 // pred_check
          %p222 = pneg %p148
        $region30: #{tpu_custom_call.1} parent=11 // pred_check_branch
          %224 = sbr.rel (%p222) target = $region32
        $region31: #{tpu_custom_call.1} parent=11 // pred_region
          _
        $region32: #{tpu_custom_call.1} parent=11 // pred_fallthru
          _
        // Predicated region
        $region33: #{tpu_custom_call.1} parent=11 // pred_check
          %p225 = pneg %p169
        $region34: #{tpu_custom_call.1} parent=11 // pred_check_branch
          %227 = sbr.rel (%p225) target = $region36
        $region35: #{tpu_custom_call.1} parent=11 // pred_region
          _
        $region36: #{tpu_custom_call.1} parent=11 // pred_fallthru
          _
      $region12: #{tpu_custom_call.1} parent=5 // pred_fallthru
        _
      %p228 = scmp.lt.s32.totalorder %s17, 3
      // Predicated region
      $region37: #{tpu_custom_call.1} parent=5 // pred_check
        %p229 = pneg %p228
      $region38: #{tpu_custom_call.1} parent=5 // pred_check_branch
        %231 = sbr.rel (%p229) target = $region40
      $region39: #{tpu_custom_call.1} parent=5 // pred_region
        // Predicated region
        $region41: #{tpu_custom_call.1} parent=39 // pred_check
          %p232 = pneg %p37
        $region42: #{tpu_custom_call.1} parent=39 // pred_check_branch
          %234 = sbr.rel (%p232) target = $region44
        $region43: #{tpu_custom_call.1} parent=39 // pred_region
          %s235 = smul.u32 16, %s17
          %s236 = ssub.s32 40, %s235
          %p237 = scmp.lt.s32.totalorder %s236, 16
          %s238 = scalar_select %p237, %s236, 16
          %s239 = smul.u32 16, %s238
          %p240 = scmp.lt.s32.totalorder %s235, 39
          %s241 = scalar_select %p240, %s235, 39
          %s242 = scalar_lea.vmem %s0, %s241
          %s243 = smul.u32 16, %s17
          %s244 = ssub.s32 40, %s243
          %p245 = scmp.lt.s32.totalorder %s244, 16
          %s246 = scalar_select %p245, %s244, 16
          %s247 = smul.u32 16, %s246
        $region44: #{tpu_custom_call.1} parent=39 // pred_fallthru
          _
      $region40: #{tpu_custom_call.1} parent=5 // pred_fallthru
        _
      %p248 = scmp.le.s32.totalorder 1, %s17
      %p249 = scmp.lt.s32.totalorder %s17, 4
      %p250 = pnand %p248, %p249
      %p251 = pneg %p250
      // Predicated region
      $region45: #{tpu_custom_call.1} parent=5 // pred_check
        _
      $region46: #{tpu_custom_call.1} parent=5 // pred_check_branch
        %253 = sbr.rel (%p250) target = $region48
      $region47: #{tpu_custom_call.1} parent=5 // pred_region
        %s254 = ssub.s32 %s17, 1
        %s255 = smul.u32 16, %s22
        %s256 = ssub.s32 40, %s255
        %p257 = scmp.lt.s32.totalorder %s256, 16
        %s258 = scalar_select %p257, %s256, 16
        %s259 = smul.u32 16, %s258
        %p260 = scmp.lt.s32.totalorder %s255, 39
        %s261 = scalar_select %p260, %s255, 39
        %s262 = scalar_lea.vmem %s0, %s261
        %p263 = pneg %p43
        %p264 = pneg %p40
        %p265 = pneg %p64
        %p266 = pneg %p61
        %p267 = pneg %p85
        %p268 = pneg %p82
        %p269 = pneg %p106
        %p270 = pneg %p103
        %p271 = pneg %p127
        %p272 = pneg %p124
        %p273 = pneg %p148
        %p274 = pneg %p145
        %p275 = pneg %p169
        %p276 = pneg %p166
        %p277 = pneg %p195
        %p278 = pneg %p192
        %s279 = sand.u32 %s182, 1
        %s280 = scalar_lea.sflag [#allocation4], %s279
        %s281 = sand.u32 %s182, 1
        %s282 = smul.addr %s281, 16
        %s283 = scalar_lea.vmem [#allocation3], %s282
        %s284 = smul.u32 16, %s22
        %s285 = ssub.s32 40, %s284
        %p286 = scmp.lt.s32.totalorder %s285, 16
        %s287 = scalar_select %p286, %s285, 16
        %s288 = smul.u32 16, %s287
        %p289 = scmp.lt.s32.totalorder %s284, 39
        %s290 = scalar_select %p289, %s284, 39
        %s291 = scalar_lea.vmem %s0, %s290
        %s292 = smul.u32 16, %s22
        %s293 = ssub.s32 40, %s292
        %p294 = scmp.lt.s32.totalorder %s293, 16
        %s295 = scalar_select %p294, %s293, 16
        %s296 = smul.u32 16, %s295
        %s297 = smul.u32 16, %s22
        %s298 = ssub.s32 40, %s297
        %p299 = scmp.lt.s32.totalorder %s298, 16
        %s300 = scalar_select %p299, %s298, 16
        %s301 = smul.u32 16, %s300
        %v303 = vld [vmem:[%s291] sm:$0xff]
        %v304 = vld [vmem:[%s291 + $0x8] sm:$0xff]
        %v305 = vld [vmem:[%s1] sm:$0xff]
        %v306 = vld [vmem:[%s1 + $0x8] sm:$0xff]
        %v307 = vld [vmem:[%s1 + $0x10] sm:$0xff]
        %v308 = vld [vmem:[%s1 + $0x18] sm:$0xff]
        %310 = vset.pattern.permute.xlu0 0
        %311 = vperm.xlu0 %310, %v305
        %v312 = vpop.permute.xlu0 %311
        %315 = vset.pattern.permute.xlu0 0
        %316 = vperm.xlu0 %315, %v306
        %v317 = vpop.permute.xlu0 %316
        %320 = vset.pattern.permute.xlu0 0
        %321 = vperm.xlu0 %320, %v307
        %v322 = vpop.permute.xlu0 %321
        %325 = vset.pattern.permute.xlu0 0
        %326 = vperm.xlu0 %325, %v308
        %v327 = vpop.permute.xlu0 %326
        %v331 = vlaneseq
        %v332 = vshrl.u32 %v331, 7
        %v333 = vsub.s32 0, %v332
        %v334 = vrot.slane %v303, %v333
        %v335 = vlaneseq
        %v336 = vshrl.u32 %v335, 7
        %v337 = vsub.s32 1, %v336
        %v338 = vrot.slane %v303, %v337
        %v339 = vlaneseq
        %v340 = vshrl.u32 %v339, 7
        %v341 = vsub.s32 2, %v340
        %v342 = vrot.slane %v303, %v341
        %v343 = vlaneseq
        %v344 = vshrl.u32 %v343, 7
        %v345 = vsub.s32 3, %v344
        %v346 = vrot.slane %v303, %v345
        %v347 = vlaneseq
        %v348 = vshrl.u32 %v347, 7
        %v349 = vsub.s32 4, %v348
        %v350 = vrot.slane %v303, %v349
        %v351 = vlaneseq
        %v352 = vshrl.u32 %v351, 7
        %v353 = vsub.s32 5, %v352
        %v354 = vrot.slane %v303, %v353
        %v355 = vlaneseq
        %v356 = vshrl.u32 %v355, 7
        %v357 = vsub.s32 6, %v356
        %v358 = vrot.slane %v303, %v357
        %v359 = vlaneseq
        %v360 = vshrl.u32 %v359, 7
        %v361 = vsub.s32 7, %v360
        %v362 = vrot.slane %v303, %v361
        %v363 = vlaneseq
        %v364 = vshrl.u32 %v363, 7
        %v365 = vsub.s32 0, %v364
        %v366 = vrot.slane %v304, %v365
        %v367 = vlaneseq
        %v368 = vshrl.u32 %v367, 7
        %v369 = vsub.s32 1, %v368
        %v370 = vrot.slane %v304, %v369
        %v371 = vlaneseq
        %v372 = vshrl.u32 %v371, 7
        %v373 = vsub.s32 2, %v372
        %v374 = vrot.slane %v304, %v373
        %v375 = vlaneseq
        %v376 = vshrl.u32 %v375, 7
        %v377 = vsub.s32 3, %v376
        %v378 = vrot.slane %v304, %v377
        %v379 = vlaneseq
        %v380 = vshrl.u32 %v379, 7
        %v381 = vsub.s32 4, %v380
        %v382 = vrot.slane %v304, %v381
        %v383 = vlaneseq
        %v384 = vshrl.u32 %v383, 7
        %v385 = vsub.s32 5, %v384
        %v386 = vrot.slane %v304, %v385
        %v387 = vlaneseq
        %v388 = vshrl.u32 %v387, 7
        %v389 = vsub.s32 6, %v388
        %v390 = vrot.slane %v304, %v389
        %v391 = vlaneseq
        %v392 = vshrl.u32 %v391, 7
        %v393 = vsub.s32 7, %v392
        %v394 = vrot.slane %v304, %v393
        %v411 = vmul.f32 %v312, %v334
        %v412 = vmul.f32 %v312, %v338
        %v413 = vmul.f32 %v312, %v342
        %v414 = vmul.f32 %v312, %v346
        %v415 = vmul.f32 %v312, %v350
        %v416 = vmul.f32 %v312, %v354
        %v417 = vmul.f32 %v312, %v358
        %v418 = vmul.f32 %v312, %v362
        %v419 = vmul.f32 %v312, %v366
        %v420 = vmul.f32 %v312, %v370
        %v421 = vmul.f32 %v312, %v374
        %v422 = vmul.f32 %v312, %v378
        %v423 = vmul.f32 %v312, %v382
        %v424 = vmul.f32 %v312, %v386
        %v425 = vmul.f32 %v312, %v390
        %v426 = vmul.f32 %v312, %v394
        %v427 = vmul.f32 %v317, %v334
        %v428 = vmul.f32 %v317, %v338
        %v429 = vmul.f32 %v317, %v342
        %v430 = vmul.f32 %v317, %v346
        %v431 = vmul.f32 %v317, %v350
        %v432 = vmul.f32 %v317, %v354
        %v433 = vmul.f32 %v317, %v358
        %v434 = vmul.f32 %v317, %v362
        %v435 = vmul.f32 %v317, %v366
        %v436 = vmul.f32 %v317, %v370
        %v437 = vmul.f32 %v317, %v374
        %v438 = vmul.f32 %v317, %v378
        %v439 = vmul.f32 %v317, %v382
        %v440 = vmul.f32 %v317, %v386
        %v441 = vmul.f32 %v317, %v390
        %v442 = vmul.f32 %v317, %v394
        %v443 = vmul.f32 %v322, %v334
        %v444 = vmul.f32 %v322, %v338
        %v445 = vmul.f32 %v322, %v342
        %v446 = vmul.f32 %v322, %v346
        %v447 = vmul.f32 %v322, %v350
        %v448 = vmul.f32 %v322, %v354
        %v449 = vmul.f32 %v322, %v358
        %v450 = vmul.f32 %v322, %v362
        %v451 = vmul.f32 %v322, %v366
        %v452 = vmul.f32 %v322, %v370
        %v453 = vmul.f32 %v322, %v374
        %v454 = vmul.f32 %v322, %v378
        %v455 = vmul.f32 %v322, %v382
        %v456 = vmul.f32 %v322, %v386
        %v457 = vmul.f32 %v322, %v390
        %v458 = vmul.f32 %v322, %v394
        %v459 = vmul.f32 %v327, %v334
        %v460 = vmul.f32 %v327, %v338
        %v461 = vmul.f32 %v327, %v342
        %v462 = vmul.f32 %v327, %v346
        %v463 = vmul.f32 %v327, %v350
        %v464 = vmul.f32 %v327, %v354
        %v465 = vmul.f32 %v327, %v358
        %v466 = vmul.f32 %v327, %v362
        %v467 = vmul.f32 %v327, %v366
        %v468 = vmul.f32 %v327, %v370
        %v469 = vmul.f32 %v327, %v374
        %v470 = vmul.f32 %v327, %v378
        %v471 = vmul.f32 %v327, %v382
        %v472 = vmul.f32 %v327, %v386
        %v473 = vmul.f32 %v327, %v390
        %v474 = vmul.f32 %v327, %v394
        %v475 = vld [vmem:[%s2] sm:$0xff]
        %v476 = vld [vmem:[%s2 + $0x8] sm:$0xff]
        %v477 = vld [vmem:[%s2 + $0x10] sm:$0xff]
        %v478 = vld [vmem:[%s2 + $0x18] sm:$0xff]
        %480 = vset.pattern.permute.xlu0 0
        %481 = vperm.xlu0 %480, %v475
        %v482 = vpop.permute.xlu0 %481
        %485 = vset.pattern.permute.xlu0 0
        %486 = vperm.xlu0 %485, %v476
        %v487 = vpop.permute.xlu0 %486
        %490 = vset.pattern.permute.xlu0 0
        %491 = vperm.xlu0 %490, %v477
        %v492 = vpop.permute.xlu0 %491
        %495 = vset.pattern.permute.xlu0 0
        %496 = vperm.xlu0 %495, %v478
        %v497 = vpop.permute.xlu0 %496
        %v499 = vadd.f32 %v411, %v482
        %v500 = vadd.f32 %v412, %v482
        %v501 = vadd.f32 %v413, %v482
        %v502 = vadd.f32 %v414, %v482
        %v503 = vadd.f32 %v415, %v482
        %v504 = vadd.f32 %v416, %v482
        %v505 = vadd.f32 %v417, %v482
        %v506 = vadd.f32 %v418, %v482
        %v507 = vadd.f32 %v419, %v482
        %v508 = vadd.f32 %v420, %v482
        %v509 = vadd.f32 %v421, %v482
        %v510 = vadd.f32 %v422, %v482
        %v511 = vadd.f32 %v423, %v482
        %v512 = vadd.f32 %v424, %v482
        %v513 = vadd.f32 %v425, %v482
        %v514 = vadd.f32 %v426, %v482
        %v515 = vadd.f32 %v427, %v487
        %v516 = vadd.f32 %v428, %v487
        %v517 = vadd.f32 %v429, %v487
        %v518 = vadd.f32 %v430, %v487
        %v519 = vadd.f32 %v431, %v487
        %v520 = vadd.f32 %v432, %v487
        %v521 = vadd.f32 %v433, %v487
        %v522 = vadd.f32 %v434, %v487
        %v523 = vadd.f32 %v435, %v487
        %v524 = vadd.f32 %v436, %v487
        %v525 = vadd.f32 %v437, %v487
        %v526 = vadd.f32 %v438, %v487
        %v527 = vadd.f32 %v439, %v487
        %v528 = vadd.f32 %v440, %v487
        %v529 = vadd.f32 %v441, %v487
        %v530 = vadd.f32 %v442, %v487
        %v531 = vadd.f32 %v443, %v492
        %v532 = vadd.f32 %v444, %v492
        %v533 = vadd.f32 %v445, %v492
        %v534 = vadd.f32 %v446, %v492
        %v535 = vadd.f32 %v447, %v492
        %v536 = vadd.f32 %v448, %v492
        %v537 = vadd.f32 %v449, %v492
        %v538 = vadd.f32 %v450, %v492
        %v539 = vadd.f32 %v451, %v492
        %v540 = vadd.f32 %v452, %v492
        %v541 = vadd.f32 %v453, %v492
        %v542 = vadd.f32 %v454, %v492
        %v543 = vadd.f32 %v455, %v492
        %v544 = vadd.f32 %v456, %v492
        %v545 = vadd.f32 %v457, %v492
        %v546 = vadd.f32 %v458, %v492
        %v547 = vadd.f32 %v459, %v497
        %v548 = vadd.f32 %v460, %v497
        %v549 = vadd.f32 %v461, %v497
        %v550 = vadd.f32 %v462, %v497
        %v551 = vadd.f32 %v463, %v497
        %v552 = vadd.f32 %v464, %v497
        %v553 = vadd.f32 %v465, %v497
        %v554 = vadd.f32 %v466, %v497
        %v555 = vadd.f32 %v467, %v497
        %v556 = vadd.f32 %v468, %v497
        %v557 = vadd.f32 %v469, %v497
        %v558 = vadd.f32 %v470, %v497
        %v559 = vadd.f32 %v471, %v497
        %v560 = vadd.f32 %v472, %v497
        %v561 = vadd.f32 %v473, %v497
        %v562 = vadd.f32 %v474, %v497
        %v563 = vmax.f32 %v499, 0.0
        %v564 = vmax.f32 %v500, 0.0
        %v565 = vmax.f32 %v501, 0.0
        %v566 = vmax.f32 %v502, 0.0
        %v567 = vmax.f32 %v503, 0.0
        %v568 = vmax.f32 %v504, 0.0
        %v569 = vmax.f32 %v505, 0.0
        %v570 = vmax.f32 %v506, 0.0
        %v571 = vmax.f32 %v507, 0.0
        %v572 = vmax.f32 %v508, 0.0
        %v573 = vmax.f32 %v509, 0.0
        %v574 = vmax.f32 %v510, 0.0
        %v575 = vmax.f32 %v511, 0.0
        %v576 = vmax.f32 %v512, 0.0
        %v577 = vmax.f32 %v513, 0.0
        %v578 = vmax.f32 %v514, 0.0
        %v579 = vmax.f32 %v515, 0.0
        %v580 = vmax.f32 %v516, 0.0
        %v581 = vmax.f32 %v517, 0.0
        %v582 = vmax.f32 %v518, 0.0
        %v583 = vmax.f32 %v519, 0.0
        %v584 = vmax.f32 %v520, 0.0
        %v585 = vmax.f32 %v521, 0.0
        %v586 = vmax.f32 %v522, 0.0
        %v587 = vmax.f32 %v523, 0.0
        %v588 = vmax.f32 %v524, 0.0
        %v589 = vmax.f32 %v525, 0.0
        %v590 = vmax.f32 %v526, 0.0
        %v591 = vmax.f32 %v527, 0.0
        %v592 = vmax.f32 %v528, 0.0
        %v593 = vmax.f32 %v529, 0.0
        %v594 = vmax.f32 %v530, 0.0
        %v595 = vmax.f32 %v531, 0.0
        %v596 = vmax.f32 %v532, 0.0
        %v597 = vmax.f32 %v533, 0.0
        %v598 = vmax.f32 %v534, 0.0
        %v599 = vmax.f32 %v535, 0.0
        %v600 = vmax.f32 %v536, 0.0
        %v601 = vmax.f32 %v537, 0.0
        %v602 = vmax.f32 %v538, 0.0
        %v603 = vmax.f32 %v539, 0.0
        %v604 = vmax.f32 %v540, 0.0
        %v605 = vmax.f32 %v541, 0.0
        %v606 = vmax.f32 %v542, 0.0
        %v607 = vmax.f32 %v543, 0.0
        %v608 = vmax.f32 %v544, 0.0
        %v609 = vmax.f32 %v545, 0.0
        %v610 = vmax.f32 %v546, 0.0
        %v611 = vmax.f32 %v547, 0.0
        %v612 = vmax.f32 %v548, 0.0
        %v613 = vmax.f32 %v549, 0.0
        %v614 = vmax.f32 %v550, 0.0
        %v615 = vmax.f32 %v551, 0.0
        %v616 = vmax.f32 %v552, 0.0
        %v617 = vmax.f32 %v553, 0.0
        %v618 = vmax.f32 %v554, 0.0
        %v619 = vmax.f32 %v555, 0.0
        %v620 = vmax.f32 %v556, 0.0
        %v621 = vmax.f32 %v557, 0.0
        %v622 = vmax.f32 %v558, 0.0
        %v623 = vmax.f32 %v559, 0.0
        %v624 = vmax.f32 %v560, 0.0
        %v625 = vmax.f32 %v561, 0.0
        %v626 = vmax.f32 %v562, 0.0
        %v627 = vld [vmem:[%s3] sm:$0xf]
        %v628 = vld [vmem:[%s3 + $0x4] sm:$0xf]
        %v629 = vld [vmem:[%s3 + $0x8] sm:$0xf]
        %v630 = vld [vmem:[%s3 + $0xc] sm:$0xf]
        %v631 = vpack.c.bf16 %v579, %v563
        %v632 = vpack.c.bf16 %v580, %v564
        %v633 = vpack.c.bf16 %v581, %v565
        %v634 = vpack.c.bf16 %v582, %v566
        %v635 = vpack.c.bf16 %v583, %v567
        %v636 = vpack.c.bf16 %v584, %v568
        %v637 = vpack.c.bf16 %v585, %v569
        %v638 = vpack.c.bf16 %v586, %v570
        %v639 = vpack.c.bf16 %v587, %v571
        %v640 = vpack.c.bf16 %v588, %v572
        %v641 = vpack.c.bf16 %v589, %v573
        %v642 = vpack.c.bf16 %v590, %v574
        %v643 = vpack.c.bf16 %v591, %v575
        %v644 = vpack.c.bf16 %v592, %v576
        %v645 = vpack.c.bf16 %v593, %v577
        %v646 = vpack.c.bf16 %v594, %v578
        %v647 = vpack.c.bf16 %v611, %v595
        %v648 = vpack.c.bf16 %v612, %v596
        %v649 = vpack.c.bf16 %v613, %v597
        %v650 = vpack.c.bf16 %v614, %v598
        %v651 = vpack.c.bf16 %v615, %v599
        %v652 = vpack.c.bf16 %v616, %v600
        %v653 = vpack.c.bf16 %v617, %v601
        %v654 = vpack.c.bf16 %v618, %v602
        %v655 = vpack.c.bf16 %v619, %v603
        %v656 = vpack.c.bf16 %v620, %v604
        %v657 = vpack.c.bf16 %v621, %v605
        %v658 = vpack.c.bf16 %v622, %v606
        %v659 = vpack.c.bf16 %v623, %v607
        %v660 = vpack.c.bf16 %v624, %v608
        %v661 = vpack.c.bf16 %v625, %v609
        %v662 = vpack.c.bf16 %v626, %v610
        %v663 = vld [vmem:[%s4] sm:$0xff]
        %v664 = vld [vmem:[%s4 + $0x8] sm:$0xff]
        %v665 = vld [vmem:[%s4 + $0x10] sm:$0xff]
        %v666 = vld [vmem:[%s4 + $0x18] sm:$0xff]
        %668 = vset.pattern.permute.xlu0 0
        %669 = vperm.xlu0 %668, %v663
        %v670 = vpop.permute.xlu0 %669
        %673 = vset.pattern.permute.xlu0 0
        %674 = vperm.xlu0 %673, %v664
        %v675 = vpop.permute.xlu0 %674
        %678 = vset.pattern.permute.xlu0 0
        %679 = vperm.xlu0 %678, %v665
        %v680 = vpop.permute.xlu0 %679
        %683 = vset.pattern.permute.xlu0 0
        %684 = vperm.xlu0 %683, %v666
        %v685 = vpop.permute.xlu0 %684
        %v691 = vunpack.c.l.b16 %v627
        %v692 = vunpack.c.l.b16 %v628
        %v693 = vunpack.c.l.b16 %v629
        %v694 = vunpack.c.l.b16 %v630
        %v695 = vpack.c.b16 %v692, %v691
        %v696 = vpack.c.b16 %v694, %v693
        %vm697 = vcmask 261120
        %v699 = vsel %vm697, %v695, 0
        %v702 = vsel %vm697, %v696, 0
        %704 = vmatprep.subr.bf16.mxu0 %v632
        %705 = vmatpush1.bf16.msra.mxu0 %v631
        %706 = vmatprep.subr.bf16.mxu0 %v648
        %707 = vmatpush1.bf16.msra.mxu0 %v647
        %708 = vmatprep.subr.bf16.mxu0 0
        %709 = vmatpush1.bf16.msra.mxu0 0
        %710 = vmatprep.subr.bf16.mxu0 0
        %711 = vmatpush1.bf16.msra.mxu0 0
        %712 = vmatprep.subr.bf16.mxu0 0
        %713 = vmatpush1.bf16.msra.mxu0 0
        %714 = vmatprep.subr.bf16.mxu0 0
        %715 = vmatpush1.bf16.msra.mxu0 0
        %716 = vmatprep.subr.bf16.mxu0 0
        %717 = vmatpush1.bf16.msra.mxu0 0
        %718 = vmatprep.subr.bf16.mxu0 0
        %719 = vmatpush1.bf16.msra.mxu0 0
        %720 = vmatprep.subr.bf16.mxu0 0
        %721 = vmatpush1.bf16.msra.mxu0 0
        %722 = vmatprep.subr.bf16.mxu0 0
        %723 = vmatpush1.bf16.msra.mxu0 0
        %724 = vmatprep.subr.bf16.mxu0 0
        %725 = vmatpush1.bf16.msra.mxu0 0
        %726 = vmatprep.subr.bf16.mxu0 0
        %727 = vmatpush1.bf16.msra.mxu0 0
        %728 = vmatprep.subr.bf16.mxu0 0
        %729 = vmatpush1.bf16.msra.mxu0 0
        %730 = vmatprep.subr.bf16.mxu0 0
        %731 = vmatpush1.bf16.msra.mxu0 0
        %732 = vmatprep.subr.bf16.mxu0 0
        %733 = vmatpush1.bf16.msra.mxu0 0
        %734 = vmatprep.subr.bf16.mxu0 0
        %735 = vmatpush1.bf16.msra.mxu0 0
        %736 = vmatprep.mubr.bf16.mxu0 0
        %737 = vmatmul.mubr.bf16.gmra.mrb[0].mxu0 %v699
        %v738 = vpop.f32.mrb[0].mxu0
        %v739 = vadd.f32 %v670, %v738
        %v740 = vpop.f32.mrb[0].mxu0
        %v741 = vadd.f32 %v670, %v740
        %v742 = vpop.f32.mrb[0].mxu0
        %v743 = vadd.f32 %v675, %v742
        %v744 = vpop.f32.mrb[0].mxu0
        %v745 = vadd.f32 %v675, %v744
        %746 = vmatprep.mubr.bf16.mxu0 0
        %747 = vmatmul.mubr.bf16.gmra.mrb[0].mxu0 %v702
        %v748 = vpop.f32.mrb[0].mxu0
        %v749 = vadd.f32 %v680, %v748
        %v750 = vpop.f32.mrb[0].mxu0
        %v751 = vadd.f32 %v680, %v750
        %v752 = vpop.f32.mrb[0].mxu0
        %v753 = vadd.f32 %v685, %v752
        %v754 = vpop.f32.mrb[0].mxu0
        %v755 = vadd.f32 %v685, %v754
        %756 = vdwg.mxu0
        %757 = vmatprep.subr.bf16.mxu0 %v634
        %758 = vmatpush1.bf16.msra.mxu0 %v633
        %759 = vmatprep.subr.bf16.mxu0 %v650
        %760 = vmatpush1.bf16.msra.mxu0 %v649
        %761 = vmatprep.subr.bf16.mxu0 0
        %762 = vmatpush1.bf16.msra.mxu0 0
        %763 = vmatprep.subr.bf16.mxu0 0
        %764 = vmatpush1.bf16.msra.mxu0 0
        %765 = vmatprep.subr.bf16.mxu0 0
        %766 = vmatpush1.bf16.msra.mxu0 0
        %767 = vmatprep.subr.bf16.mxu0 0
        %768 = vmatpush1.bf16.msra.mxu0 0
        %769 = vmatprep.subr.bf16.mxu0 0
        %770 = vmatpush1.bf16.msra.mxu0 0
        %771 = vmatprep.subr.bf16.mxu0 0
        %772 = vmatpush1.bf16.msra.mxu0 0
        %773 = vmatprep.subr.bf16.mxu0 0
        %774 = vmatpush1.bf16.msra.mxu0 0
        %775 = vmatprep.subr.bf16.mxu0 0
        %776 = vmatpush1.bf16.msra.mxu0 0
        %777 = vmatprep.subr.bf16.mxu0 0
        %778 = vmatpush1.bf16.msra.mxu0 0
        %779 = vmatprep.subr.bf16.mxu0 0
        %780 = vmatpush1.bf16.msra.mxu0 0
        %781 = vmatprep.subr.bf16.mxu0 0
        %782 = vmatpush1.bf16.msra.mxu0 0
        %783 = vmatprep.subr.bf16.mxu0 0
        %784 = vmatpush1.bf16.msra.mxu0 0
        %785 = vmatprep.subr.bf16.mxu0 0
        %786 = vmatpush1.bf16.msra.mxu0 0
        %787 = vmatprep.subr.bf16.mxu0 0
        %788 = vmatpush1.bf16.msra.mxu0 0
        %789 = vmatprep.mubr.bf16.mxu0 0
        %790 = vmatmul.mubr.bf16.gmra.mrb[0].mxu0 %v699
        %v791 = vpop.f32.mrb[0].mxu0
        %v792 = vadd.f32 %v670, %v791
        %v793 = vpop.f32.mrb[0].mxu0
        %v794 = vadd.f32 %v670, %v793
        %v795 = vpop.f32.mrb[0].mxu0
        %v796 = vadd.f32 %v675, %v795
        %v797 = vpop.f32.mrb[0].mxu0
        %v798 = vadd.f32 %v675, %v797
        %799 = vmatprep.mubr.bf16.mxu0 0
        %800 = vmatmul.mubr.bf16.gmra.mrb[0].mxu0 %v702
        %v801 = vpop.f32.mrb[0].mxu0
        %v802 = vadd.f32 %v680, %v801
        %v803 = vpop.f32.mrb[0].mxu0
        %v804 = vadd.f32 %v680, %v803
        %v805 = vpop.f32.mrb[0].mxu0
        %v806 = vadd.f32 %v685, %v805
        %v807 = vpop.f32.mrb[0].mxu0
        %v808 = vadd.f32 %v685, %v807
        %809 = vdwg.mxu0
        %810 = vmatprep.subr.bf16.mxu0 %v636
        %811 = vmatpush1.bf16.msra.mxu0 %v635
        %812 = vmatprep.subr.bf16.mxu0 %v652
        %813 = vmatpush1.bf16.msra.mxu0 %v651
        %814 = vmatprep.subr.bf16.mxu0 0
        %815 = vmatpush1.bf16.msra.mxu0 0
        %816 = vmatprep.subr.bf16.mxu0 0
        %817 = vmatpush1.bf16.msra.mxu0 0
        %818 = vmatprep.subr.bf16.mxu0 0
        %819 = vmatpush1.bf16.msra.mxu0 0
        %820 = vmatprep.subr.bf16.mxu0 0
        %821 = vmatpush1.bf16.msra.mxu0 0
        %822 = vmatprep.subr.bf16.mxu0 0
        %823 = vmatpush1.bf16.msra.mxu0 0
        %824 = vmatprep.subr.bf16.mxu0 0
        %825 = vmatpush1.bf16.msra.mxu0 0
        %826 = vmatprep.subr.bf16.mxu0 0
        %827 = vmatpush1.bf16.msra.mxu0 0
        %828 = vmatprep.subr.bf16.mxu0 0
        %829 = vmatpush1.bf16.msra.mxu0 0
        %830 = vmatprep.subr.bf16.mxu0 0
        %831 = vmatpush1.bf16.msra.mxu0 0
        %832 = vmatprep.subr.bf16.mxu0 0
        %833 = vmatpush1.bf16.msra.mxu0 0
        %834 = vmatprep.subr.bf16.mxu0 0
        %835 = vmatpush1.bf16.msra.mxu0 0
        %836 = vmatprep.subr.bf16.mxu0 0
        %837 = vmatpush1.bf16.msra.mxu0 0
        %838 = vmatprep.subr.bf16.mxu0 0
        %839 = vmatpush1.bf16.msra.mxu0 0
        %840 = vmatprep.subr.bf16.mxu0 0
        %841 = vmatpush1.bf16.msra.mxu0 0
        %842 = vmatprep.mubr.bf16.mxu0 0
        %843 = vmatmul.mubr.bf16.gmra.mrb[0].mxu0 %v699
        %v844 = vpop.f32.mrb[0].mxu0
        %v845 = vadd.f32 %v670, %v844
        %v846 = vpop.f32.mrb[0].mxu0
        %v847 = vadd.f32 %v670, %v846
        %v848 = vpop.f32.mrb[0].mxu0
        %v849 = vadd.f32 %v675, %v848
        %v850 = vpop.f32.mrb[0].mxu0
        %v851 = vadd.f32 %v675, %v850
        %852 = vmatprep.mubr.bf16.mxu0 0
        %853 = vmatmul.mubr.bf16.gmra.mrb[0].mxu0 %v702
        %v854 = vpop.f32.mrb[0].mxu0
        %v855 = vadd.f32 %v680, %v854
        %v856 = vpop.f32.mrb[0].mxu0
        %v857 = vadd.f32 %v680, %v856
        %v858 = vpop.f32.mrb[0].mxu0
        %v859 = vadd.f32 %v685, %v858
        %v860 = vpop.f32.mrb[0].mxu0
        %v861 = vadd.f32 %v685, %v860
        %862 = vdwg.mxu0
        %863 = vmatprep.subr.bf16.mxu0 %v638
        %864 = vmatpush1.bf16.msra.mxu0 %v637
        %865 = vmatprep.subr.bf16.mxu0 %v654
        %866 = vmatpush1.bf16.msra.mxu0 %v653
        %867 = vmatprep.subr.bf16.mxu0 0
        %868 = vmatpush1.bf16.msra.mxu0 0
        %869 = vmatprep.subr.bf16.mxu0 0
        %870 = vmatpush1.bf16.msra.mxu0 0
        %871 = vmatprep.subr.bf16.mxu0 0
        %872 = vmatpush1.bf16.msra.mxu0 0
        %873 = vmatprep.subr.bf16.mxu0 0
        %874 = vmatpush1.bf16.msra.mxu0 0
        %875 = vmatprep.subr.bf16.mxu0 0
        %876 = vmatpush1.bf16.msra.mxu0 0
        %877 = vmatprep.subr.bf16.mxu0 0
        %878 = vmatpush1.bf16.msra.mxu0 0
        %879 = vmatprep.subr.bf16.mxu0 0
        %880 = vmatpush1.bf16.msra.mxu0 0
        %881 = vmatprep.subr.bf16.mxu0 0
        %882 = vmatpush1.bf16.msra.mxu0 0
        %883 = vmatprep.subr.bf16.mxu0 0
        %884 = vmatpush1.bf16.msra.mxu0 0
        %885 = vmatprep.subr.bf16.mxu0 0
        %886 = vmatpush1.bf16.msra.mxu0 0
        %887 = vmatprep.subr.bf16.mxu0 0
        %888 = vmatpush1.bf16.msra.mxu0 0
        %889 = vmatprep.subr.bf16.mxu0 0
        %890 = vmatpush1.bf16.msra.mxu0 0
        %891 = vmatprep.subr.bf16.mxu0 0
        %892 = vmatpush1.bf16.msra.mxu0 0
        %893 = vmatprep.subr.bf16.mxu0 0
        %894 = vmatpush1.bf16.msra.mxu0 0
        %895 = vmatprep.mubr.bf16.mxu0 0
        %896 = vmatmul.mubr.bf16.gmra.mrb[0].mxu0 %v699
        %v897 = vpop.f32.mrb[0].mxu0
        %v898 = vadd.f32 %v670, %v897
        %v899 = vpop.f32.mrb[0].mxu0
        %v900 = vadd.f32 %v670, %v899
        %v901 = vpop.f32.mrb[0].mxu0
        %v902 = vadd.f32 %v675, %v901
        %v903 = vpop.f32.mrb[0].mxu0
        %v904 = vadd.f32 %v675, %v903
        %905 = vmatprep.mubr.bf16.mxu0 0
        %906 = vmatmul.mubr.bf16.gmra.mrb[0].mxu0 %v702
        %v907 = vpop.f32.mrb[0].mxu0
        %v908 = vadd.f32 %v680, %v907
        %v909 = vpop.f32.mrb[0].mxu0
        %v910 = vadd.f32 %v680, %v909
        %v911 = vpop.f32.mrb[0].mxu0
        %v912 = vadd.f32 %v685, %v911
        %v913 = vpop.f32.mrb[0].mxu0
        %v914 = vadd.f32 %v685, %v913
        %915 = vdwg.mxu0
        %916 = vmatprep.subr.bf16.mxu0 %v640
        %917 = vmatpush1.bf16.msra.mxu0 %v639
        %918 = vmatprep.subr.bf16.mxu0 %v656
        %919 = vmatpush1.bf16.msra.mxu0 %v655
        %920 = vmatprep.subr.bf16.mxu0 0
        %921 = vmatpush1.bf16.msra.mxu0 0
        %922 = vmatprep.subr.bf16.mxu0 0
        %923 = vmatpush1.bf16.msra.mxu0 0
        %924 = vmatprep.subr.bf16.mxu0 0
        %925 = vmatpush1.bf16.msra.mxu0 0
        %926 = vmatprep.subr.bf16.mxu0 0
        %927 = vmatpush1.bf16.msra.mxu0 0
        %928 = vmatprep.subr.bf16.mxu0 0
        %929 = vmatpush1.bf16.msra.mxu0 0
        %930 = vmatprep.subr.bf16.mxu0 0
        %931 = vmatpush1.bf16.msra.mxu0 0
        %932 = vmatprep.subr.bf16.mxu0 0
        %933 = vmatpush1.bf16.msra.mxu0 0
        %934 = vmatprep.subr.bf16.mxu0 0
        %935 = vmatpush1.bf16.msra.mxu0 0
        %936 = vmatprep.subr.bf16.mxu0 0
        %937 = vmatpush1.bf16.msra.mxu0 0
        %938 = vmatprep.subr.bf16.mxu0 0
        %939 = vmatpush1.bf16.msra.mxu0 0
        %940 = vmatprep.subr.bf16.mxu0 0
        %941 = vmatpush1.bf16.msra.mxu0 0
        %942 = vmatprep.subr.bf16.mxu0 0
        %943 = vmatpush1.bf16.msra.mxu0 0
        %944 = vmatprep.subr.bf16.mxu0 0
        %945 = vmatpush1.bf16.msra.mxu0 0
        %946 = vmatprep.subr.bf16.mxu0 0
        %947 = vmatpush1.bf16.msra.mxu0 0
        %948 = vmatprep.mubr.bf16.mxu0 0
        %949 = vmatmul.mubr.bf16.gmra.mrb[0].mxu0 %v699
        %v950 = vpop.f32.mrb[0].mxu0
        %v951 = vadd.f32 %v670, %v950
        %v952 = vpop.f32.mrb[0].mxu0
        %v953 = vadd.f32 %v670, %v952
        %v954 = vpop.f32.mrb[0].mxu0
        %v955 = vadd.f32 %v675, %v954
        %v956 = vpop.f32.mrb[0].mxu0
        %v957 = vadd.f32 %v675, %v956
        %958 = vmatprep.mubr.bf16.mxu0 0
        %959 = vmatmul.mubr.bf16.gmra.mrb[0].mxu0 %v702
        %v960 = vpop.f32.mrb[0].mxu0
        %v961 = vadd.f32 %v680, %v960
        %v962 = vpop.f32.mrb[0].mxu0
        %v963 = vadd.f32 %v680, %v962
        %v964 = vpop.f32.mrb[0].mxu0
        %v965 = vadd.f32 %v685, %v964
        %v966 = vpop.f32.mrb[0].mxu0
        %v967 = vadd.f32 %v685, %v966
        %968 = vdwg.mxu0
        %969 = vmatprep.subr.bf16.mxu0 %v642
        %970 = vmatpush1.bf16.msra.mxu0 %v641
        %971 = vmatprep.subr.bf16.mxu0 %v658
        %972 = vmatpush1.bf16.msra.mxu0 %v657
        %973 = vmatprep.subr.bf16.mxu0 0
        %974 = vmatpush1.bf16.msra.mxu0 0
        %975 = vmatprep.subr.bf16.mxu0 0
        %976 = vmatpush1.bf16.msra.mxu0 0
        %977 = vmatprep.subr.bf16.mxu0 0
        %978 = vmatpush1.bf16.msra.mxu0 0
        %979 = vmatprep.subr.bf16.mxu0 0
        %980 = vmatpush1.bf16.msra.mxu0 0
        %981 = vmatprep.subr.bf16.mxu0 0
        %982 = vmatpush1.bf16.msra.mxu0 0
        %983 = vmatprep.subr.bf16.mxu0 0
        %984 = vmatpush1.bf16.msra.mxu0 0
        %985 = vmatprep.subr.bf16.mxu0 0
        %986 = vmatpush1.bf16.msra.mxu0 0
        %987 = vmatprep.subr.bf16.mxu0 0
        %988 = vmatpush1.bf16.msra.mxu0 0
        %989 = vmatprep.subr.bf16.mxu0 0
        %990 = vmatpush1.bf16.msra.mxu0 0
        %991 = vmatprep.subr.bf16.mxu0 0
        %992 = vmatpush1.bf16.msra.mxu0 0
        %993 = vmatprep.subr.bf16.mxu0 0
        %994 = vmatpush1.bf16.msra.mxu0 0
        %995 = vmatprep.subr.bf16.mxu0 0
        %996 = vmatpush1.bf16.msra.mxu0 0
        %997 = vmatprep.subr.bf16.mxu0 0
        %998 = vmatpush1.bf16.msra.mxu0 0
        %999 = vmatprep.subr.bf16.mxu0 0
        %1000 = vmatpush1.bf16.msra.mxu0 0
        %1001 = vmatprep.mubr.bf16.mxu0 0
        %1002 = vmatmul.mubr.bf16.gmra.mrb[0].mxu0 %v699
        %v1003 = vpop.f32.mrb[0].mxu0
        %v1004 = vadd.f32 %v670, %v1003
        %v1005 = vpop.f32.mrb[0].mxu0
        %v1006 = vadd.f32 %v670, %v1005
        %v1007 = vpop.f32.mrb[0].mxu0
        %v1008 = vadd.f32 %v675, %v1007
        %v1009 = vpop.f32.mrb[0].mxu0
        %v1010 = vadd.f32 %v675, %v1009
        %1011 = vmatprep.mubr.bf16.mxu0 0
        %1012 = vmatmul.mubr.bf16.gmra.mrb[0].mxu0 %v702
        %v1013 = vpop.f32.mrb[0].mxu0
        %v1014 = vadd.f32 %v680, %v1013
        %v1015 = vpop.f32.mrb[0].mxu0
        %v1016 = vadd.f32 %v680, %v1015
        %v1017 = vpop.f32.mrb[0].mxu0
        %v1018 = vadd.f32 %v685, %v1017
        %v1019 = vpop.f32.mrb[0].mxu0
        %v1020 = vadd.f32 %v685, %v1019
        %1021 = vdwg.mxu0
        %1022 = vmatprep.subr.bf16.mxu0 %v644
        %1023 = vmatpush1.bf16.msra.mxu0 %v643
        %1024 = vmatprep.subr.bf16.mxu0 %v660
        %1025 = vmatpush1.bf16.msra.mxu0 %v659
        %1026 = vmatprep.subr.bf16.mxu0 0
        %1027 = vmatpush1.bf16.msra.mxu0 0
        %1028 = vmatprep.subr.bf16.mxu0 0
        %1029 = vmatpush1.bf16.msra.mxu0 0
        %1030 = vmatprep.subr.bf16.mxu0 0
        %1031 = vmatpush1.bf16.msra.mxu0 0
        %1032 = vmatprep.subr.bf16.mxu0 0
        %1033 = vmatpush1.bf16.msra.mxu0 0
        %1034 = vmatprep.subr.bf16.mxu0 0
        %1035 = vmatpush1.bf16.msra.mxu0 0
        %1036 = vmatprep.subr.bf16.mxu0 0
        %1037 = vmatpush1.bf16.msra.mxu0 0
        %1038 = vmatprep.subr.bf16.mxu0 0
        %1039 = vmatpush1.bf16.msra.mxu0 0
        %1040 = vmatprep.subr.bf16.mxu0 0
        %1041 = vmatpush1.bf16.msra.mxu0 0
        %1042 = vmatprep.subr.bf16.mxu0 0
        %1043 = vmatpush1.bf16.msra.mxu0 0
        %1044 = vmatprep.subr.bf16.mxu0 0
        %1045 = vmatpush1.bf16.msra.mxu0 0
        %1046 = vmatprep.subr.bf16.mxu0 0
        %1047 = vmatpush1.bf16.msra.mxu0 0
        %1048 = vmatprep.subr.bf16.mxu0 0
        %1049 = vmatpush1.bf16.msra.mxu0 0
        %1050 = vmatprep.subr.bf16.mxu0 0
        %1051 = vmatpush1.bf16.msra.mxu0 0
        %1052 = vmatprep.subr.bf16.mxu0 0
        %1053 = vmatpush1.bf16.msra.mxu0 0
        %1054 = vmatprep.mubr.bf16.mxu0 0
        %1055 = vmatmul.mubr.bf16.gmra.mrb[0].mxu0 %v699
        %v1056 = vpop.f32.mrb[0].mxu0
        %v1057 = vadd.f32 %v670, %v1056
        %v1058 = vpop.f32.mrb[0].mxu0
        %v1059 = vadd.f32 %v670, %v1058
        %v1060 = vpop.f32.mrb[0].mxu0
        %v1061 = vadd.f32 %v675, %v1060
        %v1062 = vpop.f32.mrb[0].mxu0
        %v1063 = vadd.f32 %v675, %v1062
        %1064 = vmatprep.mubr.bf16.mxu0 0
        %1065 = vmatmul.mubr.bf16.gmra.mrb[0].mxu0 %v702
        %v1066 = vpop.f32.mrb[0].mxu0
        %v1067 = vadd.f32 %v680, %v1066
        %v1068 = vpop.f32.mrb[0].mxu0
        %v1069 = vadd.f32 %v680, %v1068
        %v1070 = vpop.f32.mrb[0].mxu0
        %v1071 = vadd.f32 %v685, %v1070
        %v1072 = vpop.f32.mrb[0].mxu0
        %v1073 = vadd.f32 %v685, %v1072
        %1074 = vdwg.mxu0
        %1075 = vmatprep.subr.bf16.mxu0 %v646
        %1076 = vmatpush1.bf16.msra.mxu0 %v645
        %1077 = vmatprep.subr.bf16.mxu0 %v662
        %1078 = vmatpush1.bf16.msra.mxu0 %v661
        %1079 = vmatprep.subr.bf16.mxu0 0
        %1080 = vmatpush1.bf16.msra.mxu0 0
        %1081 = vmatprep.subr.bf16.mxu0 0
        %1082 = vmatpush1.bf16.msra.mxu0 0
        %1083 = vmatprep.subr.bf16.mxu0 0
        %1084 = vmatpush1.bf16.msra.mxu0 0
        %1085 = vmatprep.subr.bf16.mxu0 0
        %1086 = vmatpush1.bf16.msra.mxu0 0
        %1087 = vmatprep.subr.bf16.mxu0 0
        %1088 = vmatpush1.bf16.msra.mxu0 0
        %1089 = vmatprep.subr.bf16.mxu0 0
        %1090 = vmatpush1.bf16.msra.mxu0 0
        %1091 = vmatprep.subr.bf16.mxu0 0
        %1092 = vmatpush1.bf16.msra.mxu0 0
        %1093 = vmatprep.subr.bf16.mxu0 0
        %1094 = vmatpush1.bf16.msra.mxu0 0
        %1095 = vmatprep.subr.bf16.mxu0 0
        %1096 = vmatpush1.bf16.msra.mxu0 0
        %1097 = vmatprep.subr.bf16.mxu0 0
        %1098 = vmatpush1.bf16.msra.mxu0 0
        %1099 = vmatprep.subr.bf16.mxu0 0
        %1100 = vmatpush1.bf16.msra.mxu0 0
        %1101 = vmatprep.subr.bf16.mxu0 0
        %1102 = vmatpush1.bf16.msra.mxu0 0
        %1103 = vmatprep.subr.bf16.mxu0 0
        %1104 = vmatpush1.bf16.msra.mxu0 0
        %1105 = vmatprep.subr.bf16.mxu0 0
        %1106 = vmatpush1.bf16.msra.mxu0 0
        %1107 = vmatprep.mubr.bf16.mxu0 0
        %1108 = vmatmul.mubr.bf16.gmra.mrb[0].mxu0 %v699
        %v1109 = vpop.f32.mrb[0].mxu0
        %v1110 = vadd.f32 %v670, %v1109
        %v1111 = vpop.f32.mrb[0].mxu0
        %v1112 = vadd.f32 %v670, %v1111
        %v1113 = vpop.f32.mrb[0].mxu0
        %v1114 = vadd.f32 %v675, %v1113
        %v1115 = vpop.f32.mrb[0].mxu0
        %v1116 = vadd.f32 %v675, %v1115
        %1117 = vmatprep.mubr.bf16.mxu0 0
        %1118 = vmatmul.mubr.bf16.gmra.mrb[0].mxu0 %v702
        %v1119 = vpop.f32.mrb[0].mxu0
        %v1120 = vadd.f32 %v680, %v1119
        %v1121 = vpop.f32.mrb[0].mxu0
        %v1122 = vadd.f32 %v680, %v1121
        %v1123 = vpop.f32.mrb[0].mxu0
        %v1124 = vadd.f32 %v685, %v1123
        %v1125 = vpop.f32.mrb[0].mxu0
        %v1126 = vadd.f32 %v685, %v1125
        %1127 = vdwg.mxu0
        %v1128 = vmax.f32 %v739, 0.0
        %v1129 = vmax.f32 %v741, 0.0
        %v1130 = vmax.f32 %v792, 0.0
        %v1131 = vmax.f32 %v794, 0.0
        %v1132 = vmax.f32 %v845, 0.0
        %v1133 = vmax.f32 %v847, 0.0
        %v1134 = vmax.f32 %v898, 0.0
        %v1135 = vmax.f32 %v900, 0.0
        %v1136 = vmax.f32 %v951, 0.0
        %v1137 = vmax.f32 %v953, 0.0
        %v1138 = vmax.f32 %v1004, 0.0
        %v1139 = vmax.f32 %v1006, 0.0
        %v1140 = vmax.f32 %v1057, 0.0
        %v1141 = vmax.f32 %v1059, 0.0
        %v1142 = vmax.f32 %v1110, 0.0
        %v1143 = vmax.f32 %v1112, 0.0
        %v1144 = vmax.f32 %v743, 0.0
        %v1145 = vmax.f32 %v745, 0.0
        %v1146 = vmax.f32 %v796, 0.0
        %v1147 = vmax.f32 %v798, 0.0
        %v1148 = vmax.f32 %v849, 0.0
        %v1149 = vmax.f32 %v851, 0.0
        %v1150 = vmax.f32 %v902, 0.0
        %v1151 = vmax.f32 %v904, 0.0
        %v1152 = vmax.f32 %v955, 0.0
        %v1153 = vmax.f32 %v957, 0.0
        %v1154 = vmax.f32 %v1008, 0.0
        %v1155 = vmax.f32 %v1010, 0.0
        %v1156 = vmax.f32 %v1061, 0.0
        %v1157 = vmax.f32 %v1063, 0.0
        %v1158 = vmax.f32 %v1114, 0.0
        %v1159 = vmax.f32 %v1116, 0.0
        %v1160 = vmax.f32 %v749, 0.0
        %v1161 = vmax.f32 %v751, 0.0
        %v1162 = vmax.f32 %v802, 0.0
        %v1163 = vmax.f32 %v804, 0.0
        %v1164 = vmax.f32 %v855, 0.0
        %v1165 = vmax.f32 %v857, 0.0
        %v1166 = vmax.f32 %v908, 0.0
        %v1167 = vmax.f32 %v910, 0.0
        %v1168 = vmax.f32 %v961, 0.0
        %v1169 = vmax.f32 %v963, 0.0
        %v1170 = vmax.f32 %v1014, 0.0
        %v1171 = vmax.f32 %v1016, 0.0
        %v1172 = vmax.f32 %v1067, 0.0
        %v1173 = vmax.f32 %v1069, 0.0
        %v1174 = vmax.f32 %v1120, 0.0
        %v1175 = vmax.f32 %v1122, 0.0
        %v1176 = vmax.f32 %v753, 0.0
        %v1177 = vmax.f32 %v755, 0.0
        %v1178 = vmax.f32 %v806, 0.0
        %v1179 = vmax.f32 %v808, 0.0
        %v1180 = vmax.f32 %v859, 0.0
        %v1181 = vmax.f32 %v861, 0.0
        %v1182 = vmax.f32 %v912, 0.0
        %v1183 = vmax.f32 %v914, 0.0
        %v1184 = vmax.f32 %v965, 0.0
        %v1185 = vmax.f32 %v967, 0.0
        %v1186 = vmax.f32 %v1018, 0.0
        %v1187 = vmax.f32 %v1020, 0.0
        %v1188 = vmax.f32 %v1071, 0.0
        %v1189 = vmax.f32 %v1073, 0.0
        %v1190 = vmax.f32 %v1124, 0.0
        %v1191 = vmax.f32 %v1126, 0.0
        %v1192 = vld [vmem:[%s5] sm:$0xff]
        %v1193 = vld [vmem:[%s5 + $0x8] sm:$0xff]
        %v1194 = vld [vmem:[%s5 + $0x10] sm:$0xff]
        %v1195 = vld [vmem:[%s5 + $0x18] sm:$0xff]
        %1197 = vset.pattern.permute.xlu0 0
        %1198 = vperm.xlu0 %1197, %v1192
        %v1199 = vpop.permute.xlu0 %1198
        %1202 = vset.pattern.permute.xlu0 0
        %1203 = vperm.xlu0 %1202, %v1193
        %v1204 = vpop.permute.xlu0 %1203
        %1207 = vset.pattern.permute.xlu0 0
        %1208 = vperm.xlu0 %1207, %v1194
        %v1209 = vpop.permute.xlu0 %1208
        %1212 = vset.pattern.permute.xlu0 0
        %1213 = vperm.xlu0 %1212, %v1195
        %v1214 = vpop.permute.xlu0 %1213
        %v1216 = vmul.f32 %v1199, %v1128
        %v1217 = vmul.f32 %v1199, %v1129
        %v1218 = vmul.f32 %v1199, %v1130
        %v1219 = vmul.f32 %v1199, %v1131
        %v1220 = vmul.f32 %v1199, %v1132
        %v1221 = vmul.f32 %v1199, %v1133
        %v1222 = vmul.f32 %v1199, %v1134
        %v1223 = vmul.f32 %v1199, %v1135
        %v1224 = vmul.f32 %v1199, %v1136
        %v1225 = vmul.f32 %v1199, %v1137
        %v1226 = vmul.f32 %v1199, %v1138
        %v1227 = vmul.f32 %v1199, %v1139
        %v1228 = vmul.f32 %v1199, %v1140
        %v1229 = vmul.f32 %v1199, %v1141
        %v1230 = vmul.f32 %v1199, %v1142
        %v1231 = vmul.f32 %v1199, %v1143
        %v1232 = vmul.f32 %v1204, %v1144
        %v1233 = vmul.f32 %v1204, %v1145
        %v1234 = vmul.f32 %v1204, %v1146
        %v1235 = vmul.f32 %v1204, %v1147
        %v1236 = vmul.f32 %v1204, %v1148
        %v1237 = vmul.f32 %v1204, %v1149
        %v1238 = vmul.f32 %v1204, %v1150
        %v1239 = vmul.f32 %v1204, %v1151
        %v1240 = vmul.f32 %v1204, %v1152
        %v1241 = vmul.f32 %v1204, %v1153
        %v1242 = vmul.f32 %v1204, %v1154
        %v1243 = vmul.f32 %v1204, %v1155
        %v1244 = vmul.f32 %v1204, %v1156
        %v1245 = vmul.f32 %v1204, %v1157
        %v1246 = vmul.f32 %v1204, %v1158
        %v1247 = vmul.f32 %v1204, %v1159
        %v1248 = vmul.f32 %v1209, %v1160
        %v1249 = vmul.f32 %v1209, %v1161
        %v1250 = vmul.f32 %v1209, %v1162
        %v1251 = vmul.f32 %v1209, %v1163
        %v1252 = vmul.f32 %v1209, %v1164
        %v1253 = vmul.f32 %v1209, %v1165
        %v1254 = vmul.f32 %v1209, %v1166
        %v1255 = vmul.f32 %v1209, %v1167
        %v1256 = vmul.f32 %v1209, %v1168
        %v1257 = vmul.f32 %v1209, %v1169
        %v1258 = vmul.f32 %v1209, %v1170
        %v1259 = vmul.f32 %v1209, %v1171
        %v1260 = vmul.f32 %v1209, %v1172
        %v1261 = vmul.f32 %v1209, %v1173
        %v1262 = vmul.f32 %v1209, %v1174
        %v1263 = vmul.f32 %v1209, %v1175
        %v1264 = vmul.f32 %v1214, %v1176
        %v1265 = vmul.f32 %v1214, %v1177
        %v1266 = vmul.f32 %v1214, %v1178
        %v1267 = vmul.f32 %v1214, %v1179
        %v1268 = vmul.f32 %v1214, %v1180
        %v1269 = vmul.f32 %v1214, %v1181
        %v1270 = vmul.f32 %v1214, %v1182
        %v1271 = vmul.f32 %v1214, %v1183
        %v1272 = vmul.f32 %v1214, %v1184
        %v1273 = vmul.f32 %v1214, %v1185
        %v1274 = vmul.f32 %v1214, %v1186
        %v1275 = vmul.f32 %v1214, %v1187
        %v1276 = vmul.f32 %v1214, %v1188
        %v1277 = vmul.f32 %v1214, %v1189
        %v1278 = vmul.f32 %v1214, %v1190
        %v1279 = vmul.f32 %v1214, %v1191
        %v1280 = vadd.f32 %v1216, %v1232
        %v1281 = vadd.f32 %v1280, %v1248
        %v1282 = vadd.f32 %v1281, %v1264
        %v1283 = vrot.slane %v1282, 4
        %v1284 = vadd.f32 %v1282, %v1283
        %v1285 = vrot.slane %v1284, 2
        %v1286 = vadd.f32 %v1284, %v1285
        %v1287 = vrot.slane %v1286, 1
        %v1288 = vadd.f32 %v1286, %v1287
        %v1289 = vadd.f32 %v1217, %v1233
        %v1290 = vadd.f32 %v1289, %v1249
        %v1291 = vadd.f32 %v1290, %v1265
        %v1292 = vrot.slane %v1291, 4
        %v1293 = vadd.f32 %v1291, %v1292
        %v1294 = vrot.slane %v1293, 2
        %v1295 = vadd.f32 %v1293, %v1294
        %v1296 = vrot.slane %v1295, 1
        %v1297 = vadd.f32 %v1295, %v1296
        %v1298 = vadd.f32 %v1218, %v1234
        %v1299 = vadd.f32 %v1298, %v1250
        %v1300 = vadd.f32 %v1299, %v1266
        %v1301 = vrot.slane %v1300, 4
        %v1302 = vadd.f32 %v1300, %v1301
        %v1303 = vrot.slane %v1302, 2
        %v1304 = vadd.f32 %v1302, %v1303
        %v1305 = vrot.slane %v1304, 1
        %v1306 = vadd.f32 %v1304, %v1305
        %v1307 = vadd.f32 %v1219, %v1235
        %v1308 = vadd.f32 %v1307, %v1251
        %v1309 = vadd.f32 %v1308, %v1267
        %v1310 = vrot.slane %v1309, 4
        %v1311 = vadd.f32 %v1309, %v1310
        %v1312 = vrot.slane %v1311, 2
        %v1313 = vadd.f32 %v1311, %v1312
        %v1314 = vrot.slane %v1313, 1
        %v1315 = vadd.f32 %v1313, %v1314
        %v1316 = vadd.f32 %v1220, %v1236
        %v1317 = vadd.f32 %v1316, %v1252
        %v1318 = vadd.f32 %v1317, %v1268
        %v1319 = vrot.slane %v1318, 4
        %v1320 = vadd.f32 %v1318, %v1319
        %v1321 = vrot.slane %v1320, 2
        %v1322 = vadd.f32 %v1320, %v1321
        %v1323 = vrot.slane %v1322, 1
        %v1324 = vadd.f32 %v1322, %v1323
        %v1325 = vadd.f32 %v1221, %v1237
        %v1326 = vadd.f32 %v1325, %v1253
        %v1327 = vadd.f32 %v1326, %v1269
        %v1328 = vrot.slane %v1327, 4
        %v1329 = vadd.f32 %v1327, %v1328
        %v1330 = vrot.slane %v1329, 2
        %v1331 = vadd.f32 %v1329, %v1330
        %v1332 = vrot.slane %v1331, 1
        %v1333 = vadd.f32 %v1331, %v1332
        %v1334 = vadd.f32 %v1222, %v1238
        %v1335 = vadd.f32 %v1334, %v1254
        %v1336 = vadd.f32 %v1335, %v1270
        %v1337 = vrot.slane %v1336, 4
        %v1338 = vadd.f32 %v1336, %v1337
        %v1339 = vrot.slane %v1338, 2
        %v1340 = vadd.f32 %v1338, %v1339
        %v1341 = vrot.slane %v1340, 1
        %v1342 = vadd.f32 %v1340, %v1341
        %v1343 = vadd.f32 %v1223, %v1239
        %v1344 = vadd.f32 %v1343, %v1255
        %v1345 = vadd.f32 %v1344, %v1271
        %v1346 = vrot.slane %v1345, 4
        %v1347 = vadd.f32 %v1345, %v1346
        %v1348 = vrot.slane %v1347, 2
        %v1349 = vadd.f32 %v1347, %v1348
        %v1350 = vrot.slane %v1349, 1
        %v1351 = vadd.f32 %v1349, %v1350
        %v1352 = vadd.f32 %v1224, %v1240
        %v1353 = vadd.f32 %v1352, %v1256
        %v1354 = vadd.f32 %v1353, %v1272
        %v1355 = vrot.slane %v1354, 4
        %v1356 = vadd.f32 %v1354, %v1355
        %v1357 = vrot.slane %v1356, 2
        %v1358 = vadd.f32 %v1356, %v1357
        %v1359 = vrot.slane %v1358, 1
        %v1360 = vadd.f32 %v1358, %v1359
        %v1361 = vadd.f32 %v1225, %v1241
        %v1362 = vadd.f32 %v1361, %v1257
        %v1363 = vadd.f32 %v1362, %v1273
        %v1364 = vrot.slane %v1363, 4
        %v1365 = vadd.f32 %v1363, %v1364
        %v1366 = vrot.slane %v1365, 2
        %v1367 = vadd.f32 %v1365, %v1366
        %v1368 = vrot.slane %v1367, 1
        %v1369 = vadd.f32 %v1367, %v1368
        %v1370 = vadd.f32 %v1226, %v1242
        %v1371 = vadd.f32 %v1370, %v1258
        %v1372 = vadd.f32 %v1371, %v1274
        %v1373 = vrot.slane %v1372, 4
        %v1374 = vadd.f32 %v1372, %v1373
        %v1375 = vrot.slane %v1374, 2
        %v1376 = vadd.f32 %v1374, %v1375
        %v1377 = vrot.slane %v1376, 1
        %v1378 = vadd.f32 %v1376, %v1377
        %v1379 = vadd.f32 %v1227, %v1243
        %v1380 = vadd.f32 %v1379, %v1259
        %v1381 = vadd.f32 %v1380, %v1275
        %v1382 = vrot.slane %v1381, 4
        %v1383 = vadd.f32 %v1381, %v1382
        %v1384 = vrot.slane %v1383, 2
        %v1385 = vadd.f32 %v1383, %v1384
        %v1386 = vrot.slane %v1385, 1
        %v1387 = vadd.f32 %v1385, %v1386
        %v1388 = vadd.f32 %v1228, %v1244
        %v1389 = vadd.f32 %v1388, %v1260
        %v1390 = vadd.f32 %v1389, %v1276
        %v1391 = vrot.slane %v1390, 4
        %v1392 = vadd.f32 %v1390, %v1391
        %v1393 = vrot.slane %v1392, 2
        %v1394 = vadd.f32 %v1392, %v1393
        %v1395 = vrot.slane %v1394, 1
        %v1396 = vadd.f32 %v1394, %v1395
        %v1397 = vadd.f32 %v1229, %v1245
        %v1398 = vadd.f32 %v1397, %v1261
        %v1399 = vadd.f32 %v1398, %v1277
        %v1400 = vrot.slane %v1399, 4
        %v1401 = vadd.f32 %v1399, %v1400
        %v1402 = vrot.slane %v1401, 2
        %v1403 = vadd.f32 %v1401, %v1402
        %v1404 = vrot.slane %v1403, 1
        %v1405 = vadd.f32 %v1403, %v1404
        %v1406 = vadd.f32 %v1230, %v1246
        %v1407 = vadd.f32 %v1406, %v1262
        %v1408 = vadd.f32 %v1407, %v1278
        %v1409 = vrot.slane %v1408, 4
        %v1410 = vadd.f32 %v1408, %v1409
        %v1411 = vrot.slane %v1410, 2
        %v1412 = vadd.f32 %v1410, %v1411
        %v1413 = vrot.slane %v1412, 1
        %v1414 = vadd.f32 %v1412, %v1413
        %v1415 = vadd.f32 %v1231, %v1247
        %v1416 = vadd.f32 %v1415, %v1263
        %v1417 = vadd.f32 %v1416, %v1279
        %v1418 = vrot.slane %v1417, 4
        %v1419 = vadd.f32 %v1417, %v1418
        %v1420 = vrot.slane %v1419, 2
        %v1421 = vadd.f32 %v1419, %v1420
        %v1422 = vrot.slane %v1421, 1
        %v1423 = vadd.f32 %v1421, %v1422
        %s1424 = sld [smem:[#allocation2]]
        %v1425 = vstv %s1424
        %v1426 = vadd.f32 %v1288, %v1425
        %v1427 = vadd.f32 %v1297, %v1425
        %v1428 = vadd.f32 %v1306, %v1425
        %v1429 = vadd.f32 %v1315, %v1425
        %v1430 = vadd.f32 %v1324, %v1425
        %v1431 = vadd.f32 %v1333, %v1425
        %v1432 = vadd.f32 %v1342, %v1425
        %v1433 = vadd.f32 %v1351, %v1425
        %v1434 = vadd.f32 %v1360, %v1425
        %v1435 = vadd.f32 %v1369, %v1425
        %v1436 = vadd.f32 %v1378, %v1425
        %v1437 = vadd.f32 %v1387, %v1425
        %v1438 = vadd.f32 %v1396, %v1425
        %v1439 = vadd.f32 %v1405, %v1425
        %v1440 = vadd.f32 %v1414, %v1425
        %v1441 = vadd.f32 %v1423, %v1425
        %v1458 = vcombine.low %v1426, %v1427
        %v1459 = vcombine.low %v1428, %v1429
        %v1460 = vcombine.low %v1430, %v1431
        %v1461 = vcombine.low %v1432, %v1433
        %v1463 = vunpack.c.l.s4 1966171168
        %v1464 = vunpack.c.0.s8 %v1463
        %v1465 = vlaneseq
        %v1466 = vshrl.u32 %v1465, 7
        %v1467 = vsub.s32 %v1464, %v1466
        %v1468 = vrot.slane %v1458, %v1467
        %v1470 = vunpack.c.l.s4 1966171168
        %v1471 = vunpack.c.0.s8 %v1470
        %v1472 = vlaneseq
        %v1473 = vshrl.u32 %v1472, 7
        %v1474 = vsub.s32 %v1471, %v1473
        %v1475 = vrot.slane %v1459, %v1474
        %v1477 = vunpack.c.l.s4 1966171168
        %v1478 = vunpack.c.0.s8 %v1477
        %v1479 = vlaneseq
        %v1480 = vshrl.u32 %v1479, 7
        %v1481 = vsub.s32 %v1478, %v1480
        %v1482 = vrot.slane %v1460, %v1481
        %v1484 = vunpack.c.l.s4 1966171168
        %v1485 = vunpack.c.0.s8 %v1484
        %v1486 = vlaneseq
        %v1487 = vshrl.u32 %v1486, 7
        %v1488 = vsub.s32 %v1485, %v1487
        %v1489 = vrot.slane %v1461, %v1488
        %v1490 = vcombine.low %v1468, %v1475
        %v1491 = vcombine.low %v1482, %v1489
        %v1493 = vunpack.c.l.s4 1966171168
        %v1494 = vunpack.c.0.s8 %v1493
        %v1495 = vlaneseq
        %v1496 = vshrl.u32 %v1495, 7
        %v1497 = vsub.s32 %v1494, %v1496
        %v1498 = vrot.slane %v1490, %v1497
        %v1500 = vunpack.c.l.s4 1966171168
        %v1501 = vunpack.c.0.s8 %v1500
        %v1502 = vlaneseq
        %v1503 = vshrl.u32 %v1502, 7
        %v1504 = vsub.s32 %v1501, %v1503
        %v1505 = vrot.slane %v1491, %v1504
        %v1506 = vcombine.low %v1498, %v1505
        %v1507 = vcombine.low %v1434, %v1435
        %v1508 = vcombine.low %v1436, %v1437
        %v1509 = vcombine.low %v1438, %v1439
        %v1510 = vcombine.low %v1440, %v1441
        %v1512 = vunpack.c.l.s4 1966171168
        %v1513 = vunpack.c.0.s8 %v1512
        %v1514 = vlaneseq
        %v1515 = vshrl.u32 %v1514, 7
        %v1516 = vsub.s32 %v1513, %v1515
        %v1517 = vrot.slane %v1507, %v1516
        %v1519 = vunpack.c.l.s4 1966171168
        %v1520 = vunpack.c.0.s8 %v1519
        %v1521 = vlaneseq
        %v1522 = vshrl.u32 %v1521, 7
        %v1523 = vsub.s32 %v1520, %v1522
        %v1524 = vrot.slane %v1508, %v1523
        %v1526 = vunpack.c.l.s4 1966171168
        %v1527 = vunpack.c.0.s8 %v1526
        %v1528 = vlaneseq
        %v1529 = vshrl.u32 %v1528, 7
        %v1530 = vsub.s32 %v1527, %v1529
        %v1531 = vrot.slane %v1509, %v1530
        %v1533 = vunpack.c.l.s4 1966171168
        %v1534 = vunpack.c.0.s8 %v1533
        %v1535 = vlaneseq
        %v1536 = vshrl.u32 %v1535, 7
        %v1537 = vsub.s32 %v1534, %v1536
        %v1538 = vrot.slane %v1510, %v1537
        %v1539 = vcombine.low %v1517, %v1524
        %v1540 = vcombine.low %v1531, %v1538
        %v1542 = vunpack.c.l.s4 1966171168
        %v1543 = vunpack.c.0.s8 %v1542
        %v1544 = vlaneseq
        %v1545 = vshrl.u32 %v1544, 7
        %v1546 = vsub.s32 %v1543, %v1545
        %v1547 = vrot.slane %v1539, %v1546
        %v1549 = vunpack.c.l.s4 1966171168
        %v1550 = vunpack.c.0.s8 %v1549
        %v1551 = vlaneseq
        %v1552 = vshrl.u32 %v1551, 7
        %v1553 = vsub.s32 %v1550, %v1552
        %v1554 = vrot.slane %v1540, %v1553
        %v1555 = vcombine.low %v1547, %v1554
        %1558 = vst [vmem:[%s283] sm:$0xff] %v1506
        %1559 = vst [vmem:[%s283 + $0x8] sm:$0xff] %v1555
        %s1560 = sand.u32 %s182, 1
        %s1561 = scalar_lea.sflag [#allocation4], %s1560
        %s1562 = sand.u32 %s182, 1
        %s1563 = smul.addr %s1562, 16
        %s1564 = scalar_lea.vmem [#allocation3], %s1563
        // Predicated region
        $region49: #{tpu_custom_call.1} parent=47 // pred_check
          %p1565 = pneg %p192
        $region50: #{tpu_custom_call.1} parent=47 // pred_check_branch
          %1567 = sbr.rel (%p1565) target = $region52
        $region51: #{tpu_custom_call.1} parent=47 // pred_region
          %s1568 = smul.u32 16, %s22
          %s1569 = ssub.s32 40, %s1568
          %p1570 = scmp.lt.s32.totalorder %s1569, 16
          %s1571 = scalar_select %p1570, %s1569, 16
          %s1572 = smul.u32 16, %s1571
          %s1574 = ssub.s32 256, %s1572
          %1575 = vsyncadd %s1561, %s1574
          %p1576 = scmp.ne.s32.totalorder 0, %s1572
          %s1577 = smul.addr %s1568, 16
          %s1578 = scalar_lea.hbm %s7, %s1577
          %s1579 = sshll.u32 %s1571, 4
          %s1580 = sshll.u32 %s1564, 4
          %s1581 = int_to_ptr.vmem [resolvable:$true] %s1580
          %1583 = dma.vmem_to_hbm [thread:$0]  (%p1576), %s1581, %s1579, %s1578, %s1561
        $region52: #{tpu_custom_call.1} parent=47 // pred_fallthru
          _
      $region48: #{tpu_custom_call.1} parent=5 // pred_fallthru
        _
      %p1584 = scmp.le.s32.totalorder 2, %s17
      // Predicated region
      $region53: #{tpu_custom_call.1} parent=5 // pred_check
        %p1585 = pneg %p1584
      $region54: #{tpu_custom_call.1} parent=5 // pred_check_branch
        %1587 = sbr.rel (%p1585) target = $region56
      $region55: #{tpu_custom_call.1} parent=5 // pred_region
        %s1588 = ssub.s32 %s17, 2
        // Predicated region
        $region57: #{tpu_custom_call.1} parent=55 // pred_check
          %p1589 = pneg %p198
        $region58: #{tpu_custom_call.1} parent=55 // pred_check_branch
          %1591 = sbr.rel (%p1589) target = $region60
        $region59: #{tpu_custom_call.1} parent=55 // pred_region
          %s1592 = sand.u32 %s183, 1
          %s1593 = scalar_lea.sflag [#allocation4], %s1592
          %s1594 = sand.u32 %s183, 1
          %s1595 = smul.addr %s1594, 16
          %s1596 = scalar_lea.vmem [#allocation3], %s1595
          %1597 = dma.done %s1593, 256
        $region60: #{tpu_custom_call.1} parent=55 // pred_fallthru
          _
      $region56: #{tpu_custom_call.1} parent=5 // pred_fallthru
        _
    $region6: #{tpu_custom_call.1} parent=1 // loop_footer
      %s21 = sadd.s32 1, %s17
    $region7: #{tpu_custom_call.1} parent=1 // loop_footer_branch
      %16 = sbr.rel target = $region3
    $region8: #{tpu_custom_call.1} parent=1 // loop_exit
      _
    %1598 = vsyncpa [#allocation4], 1
    %s1599 = scalar_lea.sflag [#allocation4], 1
    %1600 = vsyncpa %s1599, 1

// kernel: tpu_custom_call.1
$region0: #{tpu_custom_call.1}
  #allocation0 [shape = 'u32[]', space=smem, size = 0x4, offset = 0x4, fixed_abs, tag = 'smem constant byte address 0x4 - core index']
  #allocation1 [shape = 'u32[144,128]{1,0:T(1,128)}', space=vmem, size = 0x12000, scoped, tag = 'internal scratch']
  #allocation2 [shape = 'f32[1]{0:T(128)S(6)}', space=smem, size = 0x200, scoped, tag = 'scoped memory for tpu_custom_call.1']
  %s0 = inlined_call_operand.vmem [shape: f32[1,5000], index: 0, kind: input, shape index: {}]
  %s1 = inlined_call_operand.vmem [shape: f32[32,1], index: 1, kind: input, shape index: {}]
  %s2 = inlined_call_operand.vmem [shape: f32[32,1], index: 2, kind: input, shape index: {}]
  %s3 = inlined_call_operand.vmem [shape: bf16[32,32], index: 3, kind: input, shape index: {}]
  %s4 = inlined_call_operand.vmem [shape: f32[32,1], index: 4, kind: input, shape index: {}]
  %s5 = inlined_call_operand.vmem [shape: f32[32,1], index: 5, kind: input, shape index: {}]
  %s6 = inlined_call_operand.<no memory space> [shape: f32[1], index: 6, kind: input, shape index: {}]
  %s7 = inlined_call_operand.hbm [shape: f32[1,5000], index: 7, kind: output, shape index: {}]
  %s8 = sld [smem:[#allocation0]]
  $region61: #{tpu_custom_call.1} parent=0
    _
  %s10 = ssub.s32 1, %s8
  %s11 = scalar_select 0, %s10, %s8
  %12 = sst [smem:[#allocation2]] %s6
  $region1: #{tpu_custom_call.1} parent=0
    #allocation3 [shape = 'u8[16384]{0}', space=vmem, size = 0x4000, scoped, tag = 'output window, operand 0']
    #allocation4 [shape = 's32[2]{0}', space=sflag, size = 0x8, scoped, tag = 'scoped memory for tpu_custom_call.1']
    %13 = vsyncpa [#allocation4], 0
    %s14 = scalar_lea.sflag [#allocation4], 1
    %15 = vsyncpa %s14, 0
    loop: start=0, step=1, limit=5
    $region2: #{tpu_custom_call.1} parent=1 // loop_pre_header
      _
    $region3: #{tpu_custom_call.1} parent=1 // loop_header
      %s17 = sphi 0, %s21
      %p18 = scmp.ge.s32.totalorder %s17, 5
      %s27 = sphi 0, %s29
      %s30 = sphi 0, %s27
      %s31 = sphi 0, %s30
      %s47 = sphi 0, %s31
      %s51 = sphi 0, %s51
      %s53 = sphi 0, %s51
      %s54 = sphi 0, %s53
      %s68 = sphi 0, %s54
      %s72 = sphi 0, %s72
      %s74 = sphi 0, %s72
      %s75 = sphi 0, %s74
      %s89 = sphi 0, %s75
      %s93 = sphi 0, %s93
      %s95 = sphi 0, %s93
      %s96 = sphi 0, %s95
      %s110 = sphi 0, %s96
      %s114 = sphi 0, %s114
      %s116 = sphi 0, %s114
      %s117 = sphi 0, %s116
      %s131 = sphi 0, %s117
      %s135 = sphi 0, %s135
      %s137 = sphi 0, %s135
      %s138 = sphi 0, %s137
      %s152 = sphi 0, %s138
      %s156 = sphi 0, %s156
      %s158 = sphi 0, %s156
      %s159 = sphi 0, %s158
      %s173 = sphi 0, %s159
      %s179 = sphi 0, %s181
      %s182 = sphi 0, %s179
      %s183 = sphi 0, %s182
      %s199 = sphi 0, %s183
    $region4: #{tpu_custom_call.1} parent=1 // loop_header_branch
      %20 = sbr.rel (%p18) target = $region8
    $region5: #{tpu_custom_call.1} parent=1 // loop_body
      %s22 = ssub.s32 %s17, 1
      %s23 = ssub.s32 %s17, 2
      %s24 = sadd.s32 %s17, 1
      %s25 = ssub.s32 %s17, %s24
      %p26 = scmp.eq.s32.totalorder %s25, 0
      %s28 = sadd.s32 %s27, 1
      %s29 = scalar_select %p26, %s27, %s28
      %p32 = pneg %p26
      %p33 = scmp.eq.s32.totalorder %s17, 2
      %p34 = por %p32, %p33
      %p35 = scmp.ne.s32.totalorder %s27, %s30
      %p36 = scmp.eq.s32.totalorder %s17, 0
      %p37 = por %p35, %p36
      %p38 = scmp.ne.s32.totalorder %s27, %s30
      %p39 = scmp.eq.s32.totalorder %s22, 2
      %p40 = por %p38, %p39
      %p41 = scmp.ne.s32.totalorder %s30, %s31
      %p42 = scmp.eq.s32.totalorder %s22, 0
      %p43 = por %p41, %p42
      %p44 = scmp.ne.s32.totalorder %s30, %s31
      %p45 = scmp.eq.s32.totalorder %s23, 2
      %p46 = por %p44, %p45
      %p48 = scmp.ne.s32.totalorder %s31, %s47
      %p49 = scmp.eq.s32.totalorder %s23, 0
      %p50 = por %p48, %p49
      %s52 = sadd.s32 %s51, 1
      %p55 = scmp.eq.s32.totalorder %s17, 2
      %p56 = scmp.ne.s32.totalorder %s51, %s53
      %p57 = scmp.eq.s32.totalorder %s17, 0
      %p58 = por %p56, %p57
      %p59 = scmp.ne.s32.totalorder %s51, %s53
      %p60 = scmp.eq.s32.totalorder %s22, 2
      %p61 = por %p59, %p60
      %p62 = scmp.ne.s32.totalorder %s53, %s54
      %p63 = scmp.eq.s32.totalorder %s22, 0
      %p64 = por %p62, %p63
      %p65 = scmp.ne.s32.totalorder %s53, %s54
      %p66 = scmp.eq.s32.totalorder %s23, 2
      %p67 = por %p65, %p66
      %p69 = scmp.ne.s32.totalorder %s54, %s68
      %p70 = scmp.eq.s32.totalorder %s23, 0
      %p71 = por %p69, %p70
      %s73 = sadd.s32 %s72, 1
      %p76 = scmp.eq.s32.totalorder %s17, 2
      %p77 = scmp.ne.s32.totalorder %s72, %s74
      %p78 = scmp.eq.s32.totalorder %s17, 0
      %p79 = por %p77, %p78
      %p80 = scmp.ne.s32.totalorder %s72, %s74
      %p81 = scmp.eq.s32.totalorder %s22, 2
      %p82 = por %p80, %p81
      %p83 = scmp.ne.s32.totalorder %s74, %s75
      %p84 = scmp.eq.s32.totalorder %s22, 0
      %p85 = por %p83, %p84
      %p86 = scmp.ne.s32.totalorder %s74, %s75
      %p87 = scmp.eq.s32.totalorder %s23, 2
      %p88 = por %p86, %p87
      %p90 = scmp.ne.s32.totalorder %s75, %s89
      %p91 = scmp.eq.s32.totalorder %s23, 0
      %p92 = por %p90, %p91
      %s94 = sadd.s32 %s93, 1
      %p97 = scmp.eq.s32.totalorder %s17, 2
      %p98 = scmp.ne.s32.totalorder %s93, %s95
      %p99 = scmp.eq.s32.totalorder %s17, 0
      %p100 = por %p98, %p99
      %p101 = scmp.ne.s32.totalorder %s93, %s95
      %p102 = scmp.eq.s32.totalorder %s22, 2
      %p103 = por %p101, %p102
      %p104 = scmp.ne.s32.totalorder %s95, %s96
      %p105 = scmp.eq.s32.totalorder %s22, 0
      %p106 = por %p104, %p105
      %p107 = scmp.ne.s32.totalorder %s95, %s96
      %p108 = scmp.eq.s32.totalorder %s23, 2
      %p109 = por %p107, %p108
      %p111 = scmp.ne.s32.totalorder %s96, %s110
      %p112 = scmp.eq.s32.totalorder %s23, 0
      %p113 = por %p111, %p112
      %s115 = sadd.s32 %s114, 1
      %p118 = scmp.eq.s32.totalorder %s17, 2
      %p119 = scmp.ne.s32.totalorder %s114, %s116
      %p120 = scmp.eq.s32.totalorder %s17, 0
      %p121 = por %p119, %p120
      %p122 = scmp.ne.s32.totalorder %s114, %s116
      %p123 = scmp.eq.s32.totalorder %s22, 2
      %p124 = por %p122, %p123
      %p125 = scmp.ne.s32.totalorder %s116, %s117
      %p126 = scmp.eq.s32.totalorder %s22, 0
      %p127 = por %p125, %p126
      %p128 = scmp.ne.s32.totalorder %s116, %s117
      %p129 = scmp.eq.s32.totalorder %s23, 2
      %p130 = por %p128, %p129
      %p132 = scmp.ne.s32.totalorder %s117, %s131
      %p133 = scmp.eq.s32.totalorder %s23, 0
      %p134 = por %p132, %p133
      %s136 = sadd.s32 %s135, 1
      %p139 = scmp.eq.s32.totalorder %s17, 2
      %p140 = scmp.ne.s32.totalorder %s135, %s137
      %p141 = scmp.eq.s32.totalorder %s17, 0
      %p142 = por %p140, %p141
      %p143 = scmp.ne.s32.totalorder %s135, %s137
      %p144 = scmp.eq.s32.totalorder %s22, 2
      %p145 = por %p143, %p144
      %p146 = scmp.ne.s32.totalorder %s137, %s138
      %p147 = scmp.eq.s32.totalorder %s22, 0
      %p148 = por %p146, %p147
      %p149 = scmp.ne.s32.totalorder %s137, %s138
      %p150 = scmp.eq.s32.totalorder %s23, 2
      %p151 = por %p149, %p150
      %p153 = scmp.ne.s32.totalorder %s138, %s152
      %p154 = scmp.eq.s32.totalorder %s23, 0
      %p155 = por %p153, %p154
      %s157 = sadd.s32 %s156, 1
      %p160 = scmp.eq.s32.totalorder %s17, 2
      %p161 = scmp.ne.s32.totalorder %s156, %s158
      %p162 = scmp.eq.s32.totalorder %s17, 0
      %p163 = por %p161, %p162
      %p164 = scmp.ne.s32.totalorder %s156, %s158
      %p165 = scmp.eq.s32.totalorder %s22, 2
      %p166 = por %p164, %p165
      %p167 = scmp.ne.s32.totalorder %s158, %s159
      %p168 = scmp.eq.s32.totalorder %s22, 0
      %p169 = por %p167, %p168
      %p170 = scmp.ne.s32.totalorder %s158, %s159
      %p171 = scmp.eq.s32.totalorder %s23, 2
      %p172 = por %p170, %p171
      %p174 = scmp.ne.s32.totalorder %s159, %s173
      %p175 = scmp.eq.s32.totalorder %s23, 0
      %p176 = por %p174, %p175
      %s177 = ssub.s32 %s17, %s24
      %p178 = scmp.eq.s32.totalorder %s177, 0
      %s180 = sadd.s32 %s179, 1
      %s181 = scalar_select %p178, %s179, %s180
      %p184 = pneg %p178
      %p185 = scmp.eq.s32.totalorder %s17, 2
      %p186 = por %p184, %p185
      %p187 = scmp.ne.s32.totalorder %s179, %s182
      %p188 = scmp.eq.s32.totalorder %s17, 0
      %p189 = por %p187, %p188
      %p190 = scmp.ne.s32.totalorder %s179, %s182
      %p191 = scmp.eq.s32.totalorder %s22, 2
      %p192 = por %p190, %p191
      %p193 = scmp.ne.s32.totalorder %s182, %s183
      %p194 = scmp.eq.s32.totalorder %s22, 0
      %p195 = por %p193, %p194
      %p196 = scmp.ne.s32.totalorder %s182, %s183
      %p197 = scmp.eq.s32.totalorder %s23, 2
      %p198 = por %p196, %p197
      %p200 = scmp.ne.s32.totalorder %s183, %s199
      %p201 = scmp.eq.s32.totalorder %s23, 0
      %p202 = por %p200, %p201
      %p203 = scmp.le.s32.totalorder 1, %s17
      %p204 = scmp.lt.s32.totalorder %s17, 4
      %p205 = pnand %p203, %p204
      %p206 = pneg %p205
      // Predicated region
      $region9: #{tpu_custom_call.1} parent=5 // pred_check
        _
      $region10: #{tpu_custom_call.1} parent=5 // pred_check_branch
        %208 = sbr.rel (%p205) target = $region12
      $region11: #{tpu_custom_call.1} parent=5 // pred_region
        %s209 = ssub.s32 %s17, 1
        // Predicated region
        $region13: #{tpu_custom_call.1} parent=11 // pred_check
          %p210 = pneg %p64
        $region14: #{tpu_custom_call.1} parent=11 // pred_check_branch
          %212 = sbr.rel (%p210) target = $region16
        $region15: #{tpu_custom_call.1} parent=11 // pred_region
          _
        $region16: #{tpu_custom_call.1} parent=11 // pred_fallthru
          _
        // Predicated region
        $region17: #{tpu_custom_call.1} parent=11 // pred_check
          %p213 = pneg %p85
        $region18: #{tpu_custom_call.1} parent=11 // pred_check_branch
          %215 = sbr.rel (%p213) target = $region20
        $region19: #{tpu_custom_call.1} parent=11 // pred_region
          _
        $region20: #{tpu_custom_call.1} parent=11 // pred_fallthru
          _
        // Predicated region
        $region21: #{tpu_custom_call.1} parent=11 // pred_check
          %p216 = pneg %p106
        $region22: #{tpu_custom_call.1} parent=11 // pred_check_branch
          %218 = sbr.rel (%p216) target = $region24
        $region23: #{tpu_custom_call.1} parent=11 // pred_region
          _
        $region24: #{tpu_custom_call.1} parent=11 // pred_fallthru
          _
        // Predicated region
        $region25: #{tpu_custom_call.1} parent=11 // pred_check
          %p219 = pneg %p127
        $region26: #{tpu_custom_call.1} parent=11 // pred_check_branch
          %221 = sbr.rel (%p219) target = $region28
        $region27: #{tpu_custom_call.1} parent=11 // pred_region
          _
        $region28: #{tpu_custom_call.1} parent=11 // pred_fallthru
          _
        // Predicated region
        $region29: #{tpu_custom_call.1} parent=11 // pred_check
          %p222 = pneg %p148
        $region30: #{tpu_custom_call.1} parent=11 // pred_check_branch
          %224 = sbr.rel (%p222) target = $region32
        $region31: #{tpu_custom_call.1} parent=11 // pred_region
          _
        $region32: #{tpu_custom_call.1} parent=11 // pred_fallthru
          _
        // Predicated region
        $region33: #{tpu_custom_call.1} parent=11 // pred_check
          %p225 = pneg %p169
        $region34: #{tpu_custom_call.1} parent=11 // pred_check_branch
          %227 = sbr.rel (%p225) target = $region36
        $region35: #{tpu_custom_call.1} parent=11 // pred_region
          _
        $region36: #{tpu_custom_call.1} parent=11 // pred_fallthru
          _
      $region12: #{tpu_custom_call.1} parent=5 // pred_fallthru
        _
      %p228 = scmp.lt.s32.totalorder %s17, 3
      // Predicated region
      $region37: #{tpu_custom_call.1} parent=5 // pred_check
        %p229 = pneg %p228
      $region38: #{tpu_custom_call.1} parent=5 // pred_check_branch
        %231 = sbr.rel (%p229) target = $region40
      $region39: #{tpu_custom_call.1} parent=5 // pred_region
        // Predicated region
        $region41: #{tpu_custom_call.1} parent=39 // pred_check
          %p232 = pneg %p37
        $region42: #{tpu_custom_call.1} parent=39 // pred_check_branch
          %234 = sbr.rel (%p232) target = $region44
        $region43: #{tpu_custom_call.1} parent=39 // pred_region
          %s235 = smul.u32 16, %s17
          %s236 = ssub.s32 40, %s235
          %p237 = scmp.lt.s32.totalorder %s236, 16
          %s238 = scalar_select %p237, %s236, 16
          %s239 = smul.u32 16, %s238
          %p240 = scmp.lt.s32.totalorder %s235, 39
          %s241 = scalar_select %p240, %s235, 39
          %s242 = scalar_lea.vmem %s0, %s241
          %s243 = smul.u32 16, %s17
          %s244 = ssub.s32 40, %s243
          %p245 = scmp.lt.s32.totalorder %s244, 16
          %s246 = scalar_select %p245, %s244, 16
          %s247 = smul.u32 16, %s246
        $region44: #{tpu_custom_call.1} parent=39 // pred_fallthru
          _
      $region40: #{tpu_custom_call.1} parent=5 // pred_fallthru
        _
      %p248 = scmp.le.s32.totalorder 1, %s17
      %p249 = scmp.lt.s32.totalorder %s17, 4
      %p250 = pnand %p248, %p249
      %p251 = pneg %p250
      // Predicated region
      $region45: #{tpu_custom_call.1} parent=5 // pred_check
        _
      $region46: #{tpu_custom_call.1} parent=5 // pred_check_branch
        %253 = sbr.rel (%p250) target = $region48
      $region47: #{tpu_custom_call.1} parent=5 // pred_region
        %s254 = ssub.s32 %s17, 1
        %s255 = smul.u32 16, %s22
        %s256 = ssub.s32 40, %s255
        %p257 = scmp.lt.s32.totalorder %s256, 16
        %s258 = scalar_select %p257, %s256, 16
        %s259 = smul.u32 16, %s258
        %p260 = scmp.lt.s32.totalorder %s255, 39
        %s261 = scalar_select %p260, %s255, 39
        %s262 = scalar_lea.vmem %s0, %s261
        %p263 = pneg %p43
        %p264 = pneg %p40
        %p265 = pneg %p64
        %p266 = pneg %p61
        %p267 = pneg %p85
        %p268 = pneg %p82
        %p269 = pneg %p106
        %p270 = pneg %p103
        %p271 = pneg %p127
        %p272 = pneg %p124
        %p273 = pneg %p148
        %p274 = pneg %p145
        %p275 = pneg %p169
        %p276 = pneg %p166
        %p277 = pneg %p195
        %p278 = pneg %p192
        %s279 = sand.u32 %s182, 1
        %s280 = scalar_lea.sflag [#allocation4], %s279
        %s281 = sand.u32 %s182, 1
        %s282 = smul.addr %s281, 16
        %s283 = scalar_lea.vmem [#allocation3], %s282
        %s284 = smul.u32 16, %s22
        %s285 = ssub.s32 40, %s284
        %p286 = scmp.lt.s32.totalorder %s285, 16
        %s287 = scalar_select %p286, %s285, 16
        %s288 = smul.u32 16, %s287
        %p289 = scmp.lt.s32.totalorder %s284, 39
        %s290 = scalar_select %p289, %s284, 39
        %s291 = scalar_lea.vmem %s0, %s290
        %s292 = smul.u32 16, %s22
        %s293 = ssub.s32 40, %s292
        %p294 = scmp.lt.s32.totalorder %s293, 16
        %s295 = scalar_select %p294, %s293, 16
        %s296 = smul.u32 16, %s295
        %s297 = smul.u32 16, %s22
        %s298 = ssub.s32 40, %s297
        %p299 = scmp.lt.s32.totalorder %s298, 16
        %s300 = scalar_select %p299, %s298, 16
        %s301 = smul.u32 16, %s300
        %v303 = vld [vmem:[%s291] sm:$0xff]
        %v304 = vld [vmem:[%s291 + $0x8] sm:$0xff]
        %v305 = vld [vmem:[%s1] sm:$0xff]
        %v306 = vld [vmem:[%s1 + $0x8] sm:$0xff]
        %v307 = vld [vmem:[%s1 + $0x10] sm:$0xff]
        %v308 = vld [vmem:[%s1 + $0x18] sm:$0xff]
        %310 = vset.pattern.permute.xlu0 0
        %311 = vperm.xlu0 %310, %v305
        %v312 = vpop.permute.xlu0 %311
        %315 = vset.pattern.permute.xlu0 0
        %316 = vperm.xlu0 %315, %v306
        %v317 = vpop.permute.xlu0 %316
        %320 = vset.pattern.permute.xlu0 0
        %321 = vperm.xlu0 %320, %v307
        %v322 = vpop.permute.xlu0 %321
        %325 = vset.pattern.permute.xlu0 0
        %326 = vperm.xlu0 %325, %v308
        %v327 = vpop.permute.xlu0 %326
        %v331 = vlaneseq
        %v332 = vshrl.u32 %v331, 7
        %v333 = vsub.s32 0, %v332
        %v334 = vrot.slane %v303, %v333
        %v335 = vlaneseq
        %v336 = vshrl.u32 %v335, 7
        %v337 = vsub.s32 1, %v336
        %v338 = vrot.slane %v303, %v337
        %v339 = vlaneseq
        %v340 = vshrl.u32 %v339, 7
        %v341 = vsub.s32 2, %v340
        %v342 = vrot.slane %v303, %v341
        %v343 = vlaneseq
        %v344 = vshrl.u32 %v343, 7
        %v345 = vsub.s32 3, %v344
        %v346 = vrot.slane %v303, %v345
        %v347 = vlaneseq
        %v348 = vshrl.u32 %v347, 7
        %v349 = vsub.s32 4, %v348
        %v350 = vrot.slane %v303, %v349
        %v351 = vlaneseq
        %v352 = vshrl.u32 %v351, 7
        %v353 = vsub.s32 5, %v352
        %v354 = vrot.slane %v303, %v353
        %v355 = vlaneseq
        %v356 = vshrl.u32 %v355, 7
        %v357 = vsub.s32 6, %v356
        %v358 = vrot.slane %v303, %v357
        %v359 = vlaneseq
        %v360 = vshrl.u32 %v359, 7
        %v361 = vsub.s32 7, %v360
        %v362 = vrot.slane %v303, %v361
        %v363 = vlaneseq
        %v364 = vshrl.u32 %v363, 7
        %v365 = vsub.s32 0, %v364
        %v366 = vrot.slane %v304, %v365
        %v367 = vlaneseq
        %v368 = vshrl.u32 %v367, 7
        %v369 = vsub.s32 1, %v368
        %v370 = vrot.slane %v304, %v369
        %v371 = vlaneseq
        %v372 = vshrl.u32 %v371, 7
        %v373 = vsub.s32 2, %v372
        %v374 = vrot.slane %v304, %v373
        %v375 = vlaneseq
        %v376 = vshrl.u32 %v375, 7
        %v377 = vsub.s32 3, %v376
        %v378 = vrot.slane %v304, %v377
        %v379 = vlaneseq
        %v380 = vshrl.u32 %v379, 7
        %v381 = vsub.s32 4, %v380
        %v382 = vrot.slane %v304, %v381
        %v383 = vlaneseq
        %v384 = vshrl.u32 %v383, 7
        %v385 = vsub.s32 5, %v384
        %v386 = vrot.slane %v304, %v385
        %v387 = vlaneseq
        %v388 = vshrl.u32 %v387, 7
        %v389 = vsub.s32 6, %v388
        %v390 = vrot.slane %v304, %v389
        %v391 = vlaneseq
        %v392 = vshrl.u32 %v391, 7
        %v393 = vsub.s32 7, %v392
        %v394 = vrot.slane %v304, %v393
        %v411 = vmul.f32 %v312, %v334
        %v412 = vmul.f32 %v312, %v338
        %v413 = vmul.f32 %v312, %v342
        %v414 = vmul.f32 %v312, %v346
        %v415 = vmul.f32 %v312, %v350
        %v416 = vmul.f32 %v312, %v354
        %v417 = vmul.f32 %v312, %v358
        %v418 = vmul.f32 %v312, %v362
        %v419 = vmul.f32 %v312, %v366
        %v420 = vmul.f32 %v312, %v370
        %v421 = vmul.f32 %v312, %v374
        %v422 = vmul.f32 %v312, %v378
        %v423 = vmul.f32 %v312, %v382
        %v424 = vmul.f32 %v312, %v386
        %v425 = vmul.f32 %v312, %v390
        %v426 = vmul.f32 %v312, %v394
        %v427 = vmul.f32 %v317, %v334
        %v428 = vmul.f32 %v317, %v338
        %v429 = vmul.f32 %v317, %v342
        %v430 = vmul.f32 %v317, %v346
        %v431 = vmul.f32 %v317, %v350
        %v432 = vmul.f32 %v317, %v354
        %v433 = vmul.f32 %v317, %v358
        %v434 = vmul.f32 %v317, %v362
        %v435 = vmul.f32 %v317, %v366
        %v436 = vmul.f32 %v317, %v370
        %v437 = vmul.f32 %v317, %v374
        %v438 = vmul.f32 %v317, %v378
        %v439 = vmul.f32 %v317, %v382
        %v440 = vmul.f32 %v317, %v386
        %v441 = vmul.f32 %v317, %v390
        %v442 = vmul.f32 %v317, %v394
        %v443 = vmul.f32 %v322, %v334
        %v444 = vmul.f32 %v322, %v338
        %v445 = vmul.f32 %v322, %v342
        %v446 = vmul.f32 %v322, %v346
        %v447 = vmul.f32 %v322, %v350
        %v448 = vmul.f32 %v322, %v354
        %v449 = vmul.f32 %v322, %v358
        %v450 = vmul.f32 %v322, %v362
        %v451 = vmul.f32 %v322, %v366
        %v452 = vmul.f32 %v322, %v370
        %v453 = vmul.f32 %v322, %v374
        %v454 = vmul.f32 %v322, %v378
        %v455 = vmul.f32 %v322, %v382
        %v456 = vmul.f32 %v322, %v386
        %v457 = vmul.f32 %v322, %v390
        %v458 = vmul.f32 %v322, %v394
        %v459 = vmul.f32 %v327, %v334
        %v460 = vmul.f32 %v327, %v338
        %v461 = vmul.f32 %v327, %v342
        %v462 = vmul.f32 %v327, %v346
        %v463 = vmul.f32 %v327, %v350
        %v464 = vmul.f32 %v327, %v354
        %v465 = vmul.f32 %v327, %v358
        %v466 = vmul.f32 %v327, %v362
        %v467 = vmul.f32 %v327, %v366
        %v468 = vmul.f32 %v327, %v370
        %v469 = vmul.f32 %v327, %v374
        %v470 = vmul.f32 %v327, %v378
        %v471 = vmul.f32 %v327, %v382
        %v472 = vmul.f32 %v327, %v386
        %v473 = vmul.f32 %v327, %v390
        %v474 = vmul.f32 %v327, %v394
        %v475 = vld [vmem:[%s2] sm:$0xff]
        %v476 = vld [vmem:[%s2 + $0x8] sm:$0xff]
        %v477 = vld [vmem:[%s2 + $0x10] sm:$0xff]
        %v478 = vld [vmem:[%s2 + $0x18] sm:$0xff]
        %480 = vset.pattern.permute.xlu0 0
        %481 = vperm.xlu0 %480, %v475
        %v482 = vpop.permute.xlu0 %481
        %485 = vset.pattern.permute.xlu0 0
        %486 = vperm.xlu0 %485, %v476
        %v487 = vpop.permute.xlu0 %486
        %490 = vset.pattern.permute.xlu0 0
        %491 = vperm.xlu0 %490, %v477
        %v492 = vpop.permute.xlu0 %491
        %495 = vset.pattern.permute.xlu0 0
        %496 = vperm.xlu0 %495, %v478
        %v497 = vpop.permute.xlu0 %496
        %v499 = vadd.f32 %v411, %v482
        %v500 = vadd.f32 %v412, %v482
        %v501 = vadd.f32 %v413, %v482
        %v502 = vadd.f32 %v414, %v482
        %v503 = vadd.f32 %v415, %v482
        %v504 = vadd.f32 %v416, %v482
        %v505 = vadd.f32 %v417, %v482
        %v506 = vadd.f32 %v418, %v482
        %v507 = vadd.f32 %v419, %v482
        %v508 = vadd.f32 %v420, %v482
        %v509 = vadd.f32 %v421, %v482
        %v510 = vadd.f32 %v422, %v482
        %v511 = vadd.f32 %v423, %v482
        %v512 = vadd.f32 %v424, %v482
        %v513 = vadd.f32 %v425, %v482
        %v514 = vadd.f32 %v426, %v482
        %v515 = vadd.f32 %v427, %v487
        %v516 = vadd.f32 %v428, %v487
        %v517 = vadd.f32 %v429, %v487
        %v518 = vadd.f32 %v430, %v487
        %v519 = vadd.f32 %v431, %v487
        %v520 = vadd.f32 %v432, %v487
        %v521 = vadd.f32 %v433, %v487
        %v522 = vadd.f32 %v434, %v487
        %v523 = vadd.f32 %v435, %v487
        %v524 = vadd.f32 %v436, %v487
        %v525 = vadd.f32 %v437, %v487
        %v526 = vadd.f32 %v438, %v487
        %v527 = vadd.f32 %v439, %v487
        %v528 = vadd.f32 %v440, %v487
        %v529 = vadd.f32 %v441, %v487
        %v530 = vadd.f32 %v442, %v487
        %v531 = vadd.f32 %v443, %v492
        %v532 = vadd.f32 %v444, %v492
        %v533 = vadd.f32 %v445, %v492
        %v534 = vadd.f32 %v446, %v492
        %v535 = vadd.f32 %v447, %v492
        %v536 = vadd.f32 %v448, %v492
        %v537 = vadd.f32 %v449, %v492
        %v538 = vadd.f32 %v450, %v492
        %v539 = vadd.f32 %v451, %v492
        %v540 = vadd.f32 %v452, %v492
        %v541 = vadd.f32 %v453, %v492
        %v542 = vadd.f32 %v454, %v492
        %v543 = vadd.f32 %v455, %v492
        %v544 = vadd.f32 %v456, %v492
        %v545 = vadd.f32 %v457, %v492
        %v546 = vadd.f32 %v458, %v492
        %v547 = vadd.f32 %v459, %v497
        %v548 = vadd.f32 %v460, %v497
        %v549 = vadd.f32 %v461, %v497
        %v550 = vadd.f32 %v462, %v497
        %v551 = vadd.f32 %v463, %v497
        %v552 = vadd.f32 %v464, %v497
        %v553 = vadd.f32 %v465, %v497
        %v554 = vadd.f32 %v466, %v497
        %v555 = vadd.f32 %v467, %v497
        %v556 = vadd.f32 %v468, %v497
        %v557 = vadd.f32 %v469, %v497
        %v558 = vadd.f32 %v470, %v497
        %v559 = vadd.f32 %v471, %v497
        %v560 = vadd.f32 %v472, %v497
        %v561 = vadd.f32 %v473, %v497
        %v562 = vadd.f32 %v474, %v497
        %v563 = vmax.f32 %v499, 0.0
        %v564 = vmax.f32 %v500, 0.0
        %v565 = vmax.f32 %v501, 0.0
        %v566 = vmax.f32 %v502, 0.0
        %v567 = vmax.f32 %v503, 0.0
        %v568 = vmax.f32 %v504, 0.0
        %v569 = vmax.f32 %v505, 0.0
        %v570 = vmax.f32 %v506, 0.0
        %v571 = vmax.f32 %v507, 0.0
        %v572 = vmax.f32 %v508, 0.0
        %v573 = vmax.f32 %v509, 0.0
        %v574 = vmax.f32 %v510, 0.0
        %v575 = vmax.f32 %v511, 0.0
        %v576 = vmax.f32 %v512, 0.0
        %v577 = vmax.f32 %v513, 0.0
        %v578 = vmax.f32 %v514, 0.0
        %v579 = vmax.f32 %v515, 0.0
        %v580 = vmax.f32 %v516, 0.0
        %v581 = vmax.f32 %v517, 0.0
        %v582 = vmax.f32 %v518, 0.0
        %v583 = vmax.f32 %v519, 0.0
        %v584 = vmax.f32 %v520, 0.0
        %v585 = vmax.f32 %v521, 0.0
        %v586 = vmax.f32 %v522, 0.0
        %v587 = vmax.f32 %v523, 0.0
        %v588 = vmax.f32 %v524, 0.0
        %v589 = vmax.f32 %v525, 0.0
        %v590 = vmax.f32 %v526, 0.0
        %v591 = vmax.f32 %v527, 0.0
        %v592 = vmax.f32 %v528, 0.0
        %v593 = vmax.f32 %v529, 0.0
        %v594 = vmax.f32 %v530, 0.0
        %v595 = vmax.f32 %v531, 0.0
        %v596 = vmax.f32 %v532, 0.0
        %v597 = vmax.f32 %v533, 0.0
        %v598 = vmax.f32 %v534, 0.0
        %v599 = vmax.f32 %v535, 0.0
        %v600 = vmax.f32 %v536, 0.0
        %v601 = vmax.f32 %v537, 0.0
        %v602 = vmax.f32 %v538, 0.0
        %v603 = vmax.f32 %v539, 0.0
        %v604 = vmax.f32 %v540, 0.0
        %v605 = vmax.f32 %v541, 0.0
        %v606 = vmax.f32 %v542, 0.0
        %v607 = vmax.f32 %v543, 0.0
        %v608 = vmax.f32 %v544, 0.0
        %v609 = vmax.f32 %v545, 0.0
        %v610 = vmax.f32 %v546, 0.0
        %v611 = vmax.f32 %v547, 0.0
        %v612 = vmax.f32 %v548, 0.0
        %v613 = vmax.f32 %v549, 0.0
        %v614 = vmax.f32 %v550, 0.0
        %v615 = vmax.f32 %v551, 0.0
        %v616 = vmax.f32 %v552, 0.0
        %v617 = vmax.f32 %v553, 0.0
        %v618 = vmax.f32 %v554, 0.0
        %v619 = vmax.f32 %v555, 0.0
        %v620 = vmax.f32 %v556, 0.0
        %v621 = vmax.f32 %v557, 0.0
        %v622 = vmax.f32 %v558, 0.0
        %v623 = vmax.f32 %v559, 0.0
        %v624 = vmax.f32 %v560, 0.0
        %v625 = vmax.f32 %v561, 0.0
        %v626 = vmax.f32 %v562, 0.0
        %v627 = vld [vmem:[%s3] sm:$0xf]
        %v628 = vld [vmem:[%s3 + $0x4] sm:$0xf]
        %v629 = vld [vmem:[%s3 + $0x8] sm:$0xf]
        %v630 = vld [vmem:[%s3 + $0xc] sm:$0xf]
        %v631 = vpack.c.bf16 %v579, %v563
        %v632 = vpack.c.bf16 %v580, %v564
        %v633 = vpack.c.bf16 %v581, %v565
        %v634 = vpack.c.bf16 %v582, %v566
        %v635 = vpack.c.bf16 %v583, %v567
        %v636 = vpack.c.bf16 %v584, %v568
        %v637 = vpack.c.bf16 %v585, %v569
        %v638 = vpack.c.bf16 %v586, %v570
        %v639 = vpack.c.bf16 %v587, %v571
        %v640 = vpack.c.bf16 %v588, %v572
        %v641 = vpack.c.bf16 %v589, %v573
        %v642 = vpack.c.bf16 %v590, %v574
        %v643 = vpack.c.bf16 %v591, %v575
        %v644 = vpack.c.bf16 %v592, %v576
        %v645 = vpack.c.bf16 %v593, %v577
        %v646 = vpack.c.bf16 %v594, %v578
        %v647 = vpack.c.bf16 %v611, %v595
        %v648 = vpack.c.bf16 %v612, %v596
        %v649 = vpack.c.bf16 %v613, %v597
        %v650 = vpack.c.bf16 %v614, %v598
        %v651 = vpack.c.bf16 %v615, %v599
        %v652 = vpack.c.bf16 %v616, %v600
        %v653 = vpack.c.bf16 %v617, %v601
        %v654 = vpack.c.bf16 %v618, %v602
        %v655 = vpack.c.bf16 %v619, %v603
        %v656 = vpack.c.bf16 %v620, %v604
        %v657 = vpack.c.bf16 %v621, %v605
        %v658 = vpack.c.bf16 %v622, %v606
        %v659 = vpack.c.bf16 %v623, %v607
        %v660 = vpack.c.bf16 %v624, %v608
        %v661 = vpack.c.bf16 %v625, %v609
        %v662 = vpack.c.bf16 %v626, %v610
        %v663 = vld [vmem:[%s4] sm:$0xff]
        %v664 = vld [vmem:[%s4 + $0x8] sm:$0xff]
        %v665 = vld [vmem:[%s4 + $0x10] sm:$0xff]
        %v666 = vld [vmem:[%s4 + $0x18] sm:$0xff]
        %668 = vset.pattern.permute.xlu0 0
        %669 = vperm.xlu0 %668, %v663
        %v670 = vpop.permute.xlu0 %669
        %673 = vset.pattern.permute.xlu0 0
        %674 = vperm.xlu0 %673, %v664
        %v675 = vpop.permute.xlu0 %674
        %678 = vset.pattern.permute.xlu0 0
        %679 = vperm.xlu0 %678, %v665
        %v680 = vpop.permute.xlu0 %679
        %683 = vset.pattern.permute.xlu0 0
        %684 = vperm.xlu0 %683, %v666
        %v685 = vpop.permute.xlu0 %684
        %v691 = vunpack.c.l.b16 %v627
        %v692 = vunpack.c.l.b16 %v628
        %v693 = vunpack.c.l.b16 %v629
        %v694 = vunpack.c.l.b16 %v630
        %v695 = vpack.c.b16 %v692, %v691
        %v696 = vpack.c.b16 %v694, %v693
        %vm697 = vcmask 261120
        %v699 = vsel %vm697, %v695, 0
        %v702 = vsel %vm697, %v696, 0
        %704 = vmatprep.subr.bf16.mxu0 %v632
        %705 = vmatpush1.bf16.msra.mxu0 %v631
        %706 = vmatprep.subr.bf16.mxu0 %v648
        %707 = vmatpush1.bf16.msra.mxu0 %v647
        %708 = vmatprep.subr.bf16.mxu0 0
        %709 = vmatpush1.bf16.msra.mxu0 0
        %710 = vmatprep.subr.bf16.mxu0 0
        %711 = vmatpush1.bf16.msra.mxu0 0
        %712 = vmatprep.subr.bf16.mxu0 0
        %713 = vmatpush1.bf16.msra.mxu0 0
        %714 = vmatprep.subr.bf16.mxu0 0
        %715 = vmatpush1.bf16.msra.mxu0 0
        %716 = vmatprep.subr.bf16.mxu0 0
        %717 = vmatpush1.bf16.msra.mxu0 0
        %718 = vmatprep.subr.bf16.mxu0 0
        %719 = vmatpush1.bf16.msra.mxu0 0
        %720 = vmatprep.subr.bf16.mxu0 0
        %721 = vmatpush1.bf16.msra.mxu0 0
        %722 = vmatprep.subr.bf16.mxu0 0
        %723 = vmatpush1.bf16.msra.mxu0 0
        %724 = vmatprep.subr.bf16.mxu0 0
        %725 = vmatpush1.bf16.msra.mxu0 0
        %726 = vmatprep.subr.bf16.mxu0 0
        %727 = vmatpush1.bf16.msra.mxu0 0
        %728 = vmatprep.subr.bf16.mxu0 0
        %729 = vmatpush1.bf16.msra.mxu0 0
        %730 = vmatprep.subr.bf16.mxu0 0
        %731 = vmatpush1.bf16.msra.mxu0 0
        %732 = vmatprep.subr.bf16.mxu0 0
        %733 = vmatpush1.bf16.msra.mxu0 0
        %734 = vmatprep.subr.bf16.mxu0 0
        %735 = vmatpush1.bf16.msra.mxu0 0
        %736 = vmatprep.mubr.bf16.mxu0 0
        %737 = vmatmul.mubr.bf16.gmra.mrb[0].mxu0 %v699
        %v738 = vpop.f32.mrb[0].mxu0
        %v739 = vadd.f32 %v670, %v738
        %v740 = vpop.f32.mrb[0].mxu0
        %v741 = vadd.f32 %v670, %v740
        %v742 = vpop.f32.mrb[0].mxu0
        %v743 = vadd.f32 %v675, %v742
        %v744 = vpop.f32.mrb[0].mxu0
        %v745 = vadd.f32 %v675, %v744
        %746 = vmatprep.mubr.bf16.mxu0 0
        %747 = vmatmul.mubr.bf16.gmra.mrb[0].mxu0 %v702
        %v748 = vpop.f32.mrb[0].mxu0
        %v749 = vadd.f32 %v680, %v748
        %v750 = vpop.f32.mrb[0].mxu0
        %v751 = vadd.f32 %v680, %v750
        %v752 = vpop.f32.mrb[0].mxu0
        %v753 = vadd.f32 %v685, %v752
        %v754 = vpop.f32.mrb[0].mxu0
        %v755 = vadd.f32 %v685, %v754
        %756 = vdwg.mxu0
        %757 = vmatprep.subr.bf16.mxu0 %v634
        %758 = vmatpush1.bf16.msra.mxu0 %v633
        %759 = vmatprep.subr.bf16.mxu0 %v650
        %760 = vmatpush1.bf16.msra.mxu0 %v649
        %761 = vmatprep.subr.bf16.mxu0 0
        %762 = vmatpush1.bf16.msra.mxu0 0
        %763 = vmatprep.subr.bf16.mxu0 0
        %764 = vmatpush1.bf16.msra.mxu0 0
        %765 = vmatprep.subr.bf16.mxu0 0
        %766 = vmatpush1.bf16.msra.mxu0 0
        %767 = vmatprep.subr.bf16.mxu0 0
        %768 = vmatpush1.bf16.msra.mxu0 0
        %769 = vmatprep.subr.bf16.mxu0 0
        %770 = vmatpush1.bf16.msra.mxu0 0
        %771 = vmatprep.subr.bf16.mxu0 0
        %772 = vmatpush1.bf16.msra.mxu0 0
        %773 = vmatprep.subr.bf16.mxu0 0
        %774 = vmatpush1.bf16.msra.mxu0 0
        %775 = vmatprep.subr.bf16.mxu0 0
        %776 = vmatpush1.bf16.msra.mxu0 0
        %777 = vmatprep.subr.bf16.mxu0 0
        %778 = vmatpush1.bf16.msra.mxu0 0
        %779 = vmatprep.subr.bf16.mxu0 0
        %780 = vmatpush1.bf16.msra.mxu0 0
        %781 = vmatprep.subr.bf16.mxu0 0
        %782 = vmatpush1.bf16.msra.mxu0 0
        %783 = vmatprep.subr.bf16.mxu0 0
        %784 = vmatpush1.bf16.msra.mxu0 0
        %785 = vmatprep.subr.bf16.mxu0 0
        %786 = vmatpush1.bf16.msra.mxu0 0
        %787 = vmatprep.subr.bf16.mxu0 0
        %788 = vmatpush1.bf16.msra.mxu0 0
        %789 = vmatprep.mubr.bf16.mxu0 0
        %790 = vmatmul.mubr.bf16.gmra.mrb[0].mxu0 %v699
        %v791 = vpop.f32.mrb[0].mxu0
        %v792 = vadd.f32 %v670, %v791
        %v793 = vpop.f32.mrb[0].mxu0
        %v794 = vadd.f32 %v670, %v793
        %v795 = vpop.f32.mrb[0].mxu0
        %v796 = vadd.f32 %v675, %v795
        %v797 = vpop.f32.mrb[0].mxu0
        %v798 = vadd.f32 %v675, %v797
        %799 = vmatprep.mubr.bf16.mxu0 0
        %800 = vmatmul.mubr.bf16.gmra.mrb[0].mxu0 %v702
        %v801 = vpop.f32.mrb[0].mxu0
        %v802 = vadd.f32 %v680, %v801
        %v803 = vpop.f32.mrb[0].mxu0
        %v804 = vadd.f32 %v680, %v803
        %v805 = vpop.f32.mrb[0].mxu0
        %v806 = vadd.f32 %v685, %v805
        %v807 = vpop.f32.mrb[0].mxu0
        %v808 = vadd.f32 %v685, %v807
        %809 = vdwg.mxu0
        %810 = vmatprep.subr.bf16.mxu0 %v636
        %811 = vmatpush1.bf16.msra.mxu0 %v635
        %812 = vmatprep.subr.bf16.mxu0 %v652
        %813 = vmatpush1.bf16.msra.mxu0 %v651
        %814 = vmatprep.subr.bf16.mxu0 0
        %815 = vmatpush1.bf16.msra.mxu0 0
        %816 = vmatprep.subr.bf16.mxu0 0
        %817 = vmatpush1.bf16.msra.mxu0 0
        %818 = vmatprep.subr.bf16.mxu0 0
        %819 = vmatpush1.bf16.msra.mxu0 0
        %820 = vmatprep.subr.bf16.mxu0 0
        %821 = vmatpush1.bf16.msra.mxu0 0
        %822 = vmatprep.subr.bf16.mxu0 0
        %823 = vmatpush1.bf16.msra.mxu0 0
        %824 = vmatprep.subr.bf16.mxu0 0
        %825 = vmatpush1.bf16.msra.mxu0 0
        %826 = vmatprep.subr.bf16.mxu0 0
        %827 = vmatpush1.bf16.msra.mxu0 0
        %828 = vmatprep.subr.bf16.mxu0 0
        %829 = vmatpush1.bf16.msra.mxu0 0
        %830 = vmatprep.subr.bf16.mxu0 0
        %831 = vmatpush1.bf16.msra.mxu0 0
        %832 = vmatprep.subr.bf16.mxu0 0
        %833 = vmatpush1.bf16.msra.mxu0 0
        %834 = vmatprep.subr.bf16.mxu0 0
        %835 = vmatpush1.bf16.msra.mxu0 0
        %836 = vmatprep.subr.bf16.mxu0 0
        %837 = vmatpush1.bf16.msra.mxu0 0
        %838 = vmatprep.subr.bf16.mxu0 0
        %839 = vmatpush1.bf16.msra.mxu0 0
        %840 = vmatprep.subr.bf16.mxu0 0
        %841 = vmatpush1.bf16.msra.mxu0 0
        %842 = vmatprep.mubr.bf16.mxu0 0
        %843 = vmatmul.mubr.bf16.gmra.mrb[0].mxu0 %v699
        %v844 = vpop.f32.mrb[0].mxu0
        %v845 = vadd.f32 %v670, %v844
        %v846 = vpop.f32.mrb[0].mxu0
        %v847 = vadd.f32 %v670, %v846
        %v848 = vpop.f32.mrb[0].mxu0
        %v849 = vadd.f32 %v675, %v848
        %v850 = vpop.f32.mrb[0].mxu0
        %v851 = vadd.f32 %v675, %v850
        %852 = vmatprep.mubr.bf16.mxu0 0
        %853 = vmatmul.mubr.bf16.gmra.mrb[0].mxu0 %v702
        %v854 = vpop.f32.mrb[0].mxu0
        %v855 = vadd.f32 %v680, %v854
        %v856 = vpop.f32.mrb[0].mxu0
        %v857 = vadd.f32 %v680, %v856
        %v858 = vpop.f32.mrb[0].mxu0
        %v859 = vadd.f32 %v685, %v858
        %v860 = vpop.f32.mrb[0].mxu0
        %v861 = vadd.f32 %v685, %v860
        %862 = vdwg.mxu0
        %863 = vmatprep.subr.bf16.mxu0 %v638
        %864 = vmatpush1.bf16.msra.mxu0 %v637
        %865 = vmatprep.subr.bf16.mxu0 %v654
        %866 = vmatpush1.bf16.msra.mxu0 %v653
        %867 = vmatprep.subr.bf16.mxu0 0
        %868 = vmatpush1.bf16.msra.mxu0 0
        %869 = vmatprep.subr.bf16.mxu0 0
        %870 = vmatpush1.bf16.msra.mxu0 0
        %871 = vmatprep.subr.bf16.mxu0 0
        %872 = vmatpush1.bf16.msra.mxu0 0
        %873 = vmatprep.subr.bf16.mxu0 0
        %874 = vmatpush1.bf16.msra.mxu0 0
        %875 = vmatprep.subr.bf16.mxu0 0
        %876 = vmatpush1.bf16.msra.mxu0 0
        %877 = vmatprep.subr.bf16.mxu0 0
        %878 = vmatpush1.bf16.msra.mxu0 0
        %879 = vmatprep.subr.bf16.mxu0 0
        %880 = vmatpush1.bf16.msra.mxu0 0
        %881 = vmatprep.subr.bf16.mxu0 0
        %882 = vmatpush1.bf16.msra.mxu0 0
        %883 = vmatprep.subr.bf16.mxu0 0
        %884 = vmatpush1.bf16.msra.mxu0 0
        %885 = vmatprep.subr.bf16.mxu0 0
        %886 = vmatpush1.bf16.msra.mxu0 0
        %887 = vmatprep.subr.bf16.mxu0 0
        %888 = vmatpush1.bf16.msra.mxu0 0
        %889 = vmatprep.subr.bf16.mxu0 0
        %890 = vmatpush1.bf16.msra.mxu0 0
        %891 = vmatprep.subr.bf16.mxu0 0
        %892 = vmatpush1.bf16.msra.mxu0 0
        %893 = vmatprep.subr.bf16.mxu0 0
        %894 = vmatpush1.bf16.msra.mxu0 0
        %895 = vmatprep.mubr.bf16.mxu0 0
        %896 = vmatmul.mubr.bf16.gmra.mrb[0].mxu0 %v699
        %v897 = vpop.f32.mrb[0].mxu0
        %v898 = vadd.f32 %v670, %v897
        %v899 = vpop.f32.mrb[0].mxu0
        %v900 = vadd.f32 %v670, %v899
        %v901 = vpop.f32.mrb[0].mxu0
        %v902 = vadd.f32 %v675, %v901
        %v903 = vpop.f32.mrb[0].mxu0
        %v904 = vadd.f32 %v675, %v903
        %905 = vmatprep.mubr.bf16.mxu0 0
        %906 = vmatmul.mubr.bf16.gmra.mrb[0].mxu0 %v702
        %v907 = vpop.f32.mrb[0].mxu0
        %v908 = vadd.f32 %v680, %v907
        %v909 = vpop.f32.mrb[0].mxu0
        %v910 = vadd.f32 %v680, %v909
        %v911 = vpop.f32.mrb[0].mxu0
        %v912 = vadd.f32 %v685, %v911
        %v913 = vpop.f32.mrb[0].mxu0
        %v914 = vadd.f32 %v685, %v913
        %915 = vdwg.mxu0
        %916 = vmatprep.subr.bf16.mxu0 %v640
        %917 = vmatpush1.bf16.msra.mxu0 %v639
        %918 = vmatprep.subr.bf16.mxu0 %v656
        %919 = vmatpush1.bf16.msra.mxu0 %v655
        %920 = vmatprep.subr.bf16.mxu0 0
        %921 = vmatpush1.bf16.msra.mxu0 0
        %922 = vmatprep.subr.bf16.mxu0 0
        %923 = vmatpush1.bf16.msra.mxu0 0
        %924 = vmatprep.subr.bf16.mxu0 0
        %925 = vmatpush1.bf16.msra.mxu0 0
        %926 = vmatprep.subr.bf16.mxu0 0
        %927 = vmatpush1.bf16.msra.mxu0 0
        %928 = vmatprep.subr.bf16.mxu0 0
        %929 = vmatpush1.bf16.msra.mxu0 0
        %930 = vmatprep.subr.bf16.mxu0 0
        %931 = vmatpush1.bf16.msra.mxu0 0
        %932 = vmatprep.subr.bf16.mxu0 0
        %933 = vmatpush1.bf16.msra.mxu0 0
        %934 = vmatprep.subr.bf16.mxu0 0
        %935 = vmatpush1.bf16.msra.mxu0 0
        %936 = vmatprep.subr.bf16.mxu0 0
        %937 = vmatpush1.bf16.msra.mxu0 0
        %938 = vmatprep.subr.bf16.mxu0 0
        %939 = vmatpush1.bf16.msra.mxu0 0
        %940 = vmatprep.subr.bf16.mxu0 0
        %941 = vmatpush1.bf16.msra.mxu0 0
        %942 = vmatprep.subr.bf16.mxu0 0
        %943 = vmatpush1.bf16.msra.mxu0 0
        %944 = vmatprep.subr.bf16.mxu0 0
        %945 = vmatpush1.bf16.msra.mxu0 0
        %946 = vmatprep.subr.bf16.mxu0 0
        %947 = vmatpush1.bf16.msra.mxu0 0
        %948 = vmatprep.mubr.bf16.mxu0 0
        %949 = vmatmul.mubr.bf16.gmra.mrb[0].mxu0 %v699
        %v950 = vpop.f32.mrb[0].mxu0
        %v951 = vadd.f32 %v670, %v950
        %v952 = vpop.f32.mrb[0].mxu0
        %v953 = vadd.f32 %v670, %v952
        %v954 = vpop.f32.mrb[0].mxu0
        %v955 = vadd.f32 %v675, %v954
        %v956 = vpop.f32.mrb[0].mxu0
        %v957 = vadd.f32 %v675, %v956
        %958 = vmatprep.mubr.bf16.mxu0 0
        %959 = vmatmul.mubr.bf16.gmra.mrb[0].mxu0 %v702
        %v960 = vpop.f32.mrb[0].mxu0
        %v961 = vadd.f32 %v680, %v960
        %v962 = vpop.f32.mrb[0].mxu0
        %v963 = vadd.f32 %v680, %v962
        %v964 = vpop.f32.mrb[0].mxu0
        %v965 = vadd.f32 %v685, %v964
        %v966 = vpop.f32.mrb[0].mxu0
        %v967 = vadd.f32 %v685, %v966
        %968 = vdwg.mxu0
        %969 = vmatprep.subr.bf16.mxu0 %v642
        %970 = vmatpush1.bf16.msra.mxu0 %v641
        %971 = vmatprep.subr.bf16.mxu0 %v658
        %972 = vmatpush1.bf16.msra.mxu0 %v657
        %973 = vmatprep.subr.bf16.mxu0 0
        %974 = vmatpush1.bf16.msra.mxu0 0
        %975 = vmatprep.subr.bf16.mxu0 0
        %976 = vmatpush1.bf16.msra.mxu0 0
        %977 = vmatprep.subr.bf16.mxu0 0
        %978 = vmatpush1.bf16.msra.mxu0 0
        %979 = vmatprep.subr.bf16.mxu0 0
        %980 = vmatpush1.bf16.msra.mxu0 0
        %981 = vmatprep.subr.bf16.mxu0 0
        %982 = vmatpush1.bf16.msra.mxu0 0
        %983 = vmatprep.subr.bf16.mxu0 0
        %984 = vmatpush1.bf16.msra.mxu0 0
        %985 = vmatprep.subr.bf16.mxu0 0
        %986 = vmatpush1.bf16.msra.mxu0 0
        %987 = vmatprep.subr.bf16.mxu0 0
        %988 = vmatpush1.bf16.msra.mxu0 0
        %989 = vmatprep.subr.bf16.mxu0 0
        %990 = vmatpush1.bf16.msra.mxu0 0
        %991 = vmatprep.subr.bf16.mxu0 0
        %992 = vmatpush1.bf16.msra.mxu0 0
        %993 = vmatprep.subr.bf16.mxu0 0
        %994 = vmatpush1.bf16.msra.mxu0 0
        %995 = vmatprep.subr.bf16.mxu0 0
        %996 = vmatpush1.bf16.msra.mxu0 0
        %997 = vmatprep.subr.bf16.mxu0 0
        %998 = vmatpush1.bf16.msra.mxu0 0
        %999 = vmatprep.subr.bf16.mxu0 0
        %1000 = vmatpush1.bf16.msra.mxu0 0
        %1001 = vmatprep.mubr.bf16.mxu0 0
        %1002 = vmatmul.mubr.bf16.gmra.mrb[0].mxu0 %v699
        %v1003 = vpop.f32.mrb[0].mxu0
        %v1004 = vadd.f32 %v670, %v1003
        %v1005 = vpop.f32.mrb[0].mxu0
        %v1006 = vadd.f32 %v670, %v1005
        %v1007 = vpop.f32.mrb[0].mxu0
        %v1008 = vadd.f32 %v675, %v1007
        %v1009 = vpop.f32.mrb[0].mxu0
        %v1010 = vadd.f32 %v675, %v1009
        %1011 = vmatprep.mubr.bf16.mxu0 0
        %1012 = vmatmul.mubr.bf16.gmra.mrb[0].mxu0 %v702
        %v1013 = vpop.f32.mrb[0].mxu0
        %v1014 = vadd.f32 %v680, %v1013
        %v1015 = vpop.f32.mrb[0].mxu0
        %v1016 = vadd.f32 %v680, %v1015
        %v1017 = vpop.f32.mrb[0].mxu0
        %v1018 = vadd.f32 %v685, %v1017
        %v1019 = vpop.f32.mrb[0].mxu0
        %v1020 = vadd.f32 %v685, %v1019
        %1021 = vdwg.mxu0
        %1022 = vmatprep.subr.bf16.mxu0 %v644
        %1023 = vmatpush1.bf16.msra.mxu0 %v643
        %1024 = vmatprep.subr.bf16.mxu0 %v660
        %1025 = vmatpush1.bf16.msra.mxu0 %v659
        %1026 = vmatprep.subr.bf16.mxu0 0
        %1027 = vmatpush1.bf16.msra.mxu0 0
        %1028 = vmatprep.subr.bf16.mxu0 0
        %1029 = vmatpush1.bf16.msra.mxu0 0
        %1030 = vmatprep.subr.bf16.mxu0 0
        %1031 = vmatpush1.bf16.msra.mxu0 0
        %1032 = vmatprep.subr.bf16.mxu0 0
        %1033 = vmatpush1.bf16.msra.mxu0 0
        %1034 = vmatprep.subr.bf16.mxu0 0
        %1035 = vmatpush1.bf16.msra.mxu0 0
        %1036 = vmatprep.subr.bf16.mxu0 0
        %1037 = vmatpush1.bf16.msra.mxu0 0
        %1038 = vmatprep.subr.bf16.mxu0 0
        %1039 = vmatpush1.bf16.msra.mxu0 0
        %1040 = vmatprep.subr.bf16.mxu0 0
        %1041 = vmatpush1.bf16.msra.mxu0 0
        %1042 = vmatprep.subr.bf16.mxu0 0
        %1043 = vmatpush1.bf16.msra.mxu0 0
        %1044 = vmatprep.subr.bf16.mxu0 0
        %1045 = vmatpush1.bf16.msra.mxu0 0
        %1046 = vmatprep.subr.bf16.mxu0 0
        %1047 = vmatpush1.bf16.msra.mxu0 0
        %1048 = vmatprep.subr.bf16.mxu0 0
        %1049 = vmatpush1.bf16.msra.mxu0 0
        %1050 = vmatprep.subr.bf16.mxu0 0
        %1051 = vmatpush1.bf16.msra.mxu0 0
        %1052 = vmatprep.subr.bf16.mxu0 0
        %1053 = vmatpush1.bf16.msra.mxu0 0
        %1054 = vmatprep.mubr.bf16.mxu0 0
        %1055 = vmatmul.mubr.bf16.gmra.mrb[0].mxu0 %v699
        %v1056 = vpop.f32.mrb[0].mxu0
        %v1057 = vadd.f32 %v670, %v1056
        %v1058 = vpop.f32.mrb[0].mxu0
        %v1059 = vadd.f32 %v670, %v1058
        %v1060 = vpop.f32.mrb[0].mxu0
        %v1061 = vadd.f32 %v675, %v1060
        %v1062 = vpop.f32.mrb[0].mxu0
        %v1063 = vadd.f32 %v675, %v1062
        %1064 = vmatprep.mubr.bf16.mxu0 0
        %1065 = vmatmul.mubr.bf16.gmra.mrb[0].mxu0 %v702
        %v1066 = vpop.f32.mrb[0].mxu0
        %v1067 = vadd.f32 %v680, %v1066
        %v1068 = vpop.f32.mrb[0].mxu0
        %v1069 = vadd.f32 %v680, %v1068
        %v1070 = vpop.f32.mrb[0].mxu0
        %v1071 = vadd.f32 %v685, %v1070
        %v1072 = vpop.f32.mrb[0].mxu0
        %v1073 = vadd.f32 %v685, %v1072
        %1074 = vdwg.mxu0
        %1075 = vmatprep.subr.bf16.mxu0 %v646
        %1076 = vmatpush1.bf16.msra.mxu0 %v645
        %1077 = vmatprep.subr.bf16.mxu0 %v662
        %1078 = vmatpush1.bf16.msra.mxu0 %v661
        %1079 = vmatprep.subr.bf16.mxu0 0
        %1080 = vmatpush1.bf16.msra.mxu0 0
        %1081 = vmatprep.subr.bf16.mxu0 0
        %1082 = vmatpush1.bf16.msra.mxu0 0
        %1083 = vmatprep.subr.bf16.mxu0 0
        %1084 = vmatpush1.bf16.msra.mxu0 0
        %1085 = vmatprep.subr.bf16.mxu0 0
        %1086 = vmatpush1.bf16.msra.mxu0 0
        %1087 = vmatprep.subr.bf16.mxu0 0
        %1088 = vmatpush1.bf16.msra.mxu0 0
        %1089 = vmatprep.subr.bf16.mxu0 0
        %1090 = vmatpush1.bf16.msra.mxu0 0
        %1091 = vmatprep.subr.bf16.mxu0 0
        %1092 = vmatpush1.bf16.msra.mxu0 0
        %1093 = vmatprep.subr.bf16.mxu0 0
        %1094 = vmatpush1.bf16.msra.mxu0 0
        %1095 = vmatprep.subr.bf16.mxu0 0
        %1096 = vmatpush1.bf16.msra.mxu0 0
        %1097 = vmatprep.subr.bf16.mxu0 0
        %1098 = vmatpush1.bf16.msra.mxu0 0
        %1099 = vmatprep.subr.bf16.mxu0 0
        %1100 = vmatpush1.bf16.msra.mxu0 0
        %1101 = vmatprep.subr.bf16.mxu0 0
        %1102 = vmatpush1.bf16.msra.mxu0 0
        %1103 = vmatprep.subr.bf16.mxu0 0
        %1104 = vmatpush1.bf16.msra.mxu0 0
        %1105 = vmatprep.subr.bf16.mxu0 0
        %1106 = vmatpush1.bf16.msra.mxu0 0
        %1107 = vmatprep.mubr.bf16.mxu0 0
        %1108 = vmatmul.mubr.bf16.gmra.mrb[0].mxu0 %v699
        %v1109 = vpop.f32.mrb[0].mxu0
        %v1110 = vadd.f32 %v670, %v1109
        %v1111 = vpop.f32.mrb[0].mxu0
        %v1112 = vadd.f32 %v670, %v1111
        %v1113 = vpop.f32.mrb[0].mxu0
        %v1114 = vadd.f32 %v675, %v1113
        %v1115 = vpop.f32.mrb[0].mxu0
        %v1116 = vadd.f32 %v675, %v1115
        %1117 = vmatprep.mubr.bf16.mxu0 0
        %1118 = vmatmul.mubr.bf16.gmra.mrb[0].mxu0 %v702
        %v1119 = vpop.f32.mrb[0].mxu0
        %v1120 = vadd.f32 %v680, %v1119
        %v1121 = vpop.f32.mrb[0].mxu0
        %v1122 = vadd.f32 %v680, %v1121
        %v1123 = vpop.f32.mrb[0].mxu0
        %v1124 = vadd.f32 %v685, %v1123
        %v1125 = vpop.f32.mrb[0].mxu0
        %v1126 = vadd.f32 %v685, %v1125
        %1127 = vdwg.mxu0
        %v1128 = vmax.f32 %v739, 0.0
        %v1129 = vmax.f32 %v741, 0.0
        %v1130 = vmax.f32 %v792, 0.0
        %v1131 = vmax.f32 %v794, 0.0
        %v1132 = vmax.f32 %v845, 0.0
        %v1133 = vmax.f32 %v847, 0.0
        %v1134 = vmax.f32 %v898, 0.0
        %v1135 = vmax.f32 %v900, 0.0
        %v1136 = vmax.f32 %v951, 0.0
        %v1137 = vmax.f32 %v953, 0.0
        %v1138 = vmax.f32 %v1004, 0.0
        %v1139 = vmax.f32 %v1006, 0.0
        %v1140 = vmax.f32 %v1057, 0.0
        %v1141 = vmax.f32 %v1059, 0.0
        %v1142 = vmax.f32 %v1110, 0.0
        %v1143 = vmax.f32 %v1112, 0.0
        %v1144 = vmax.f32 %v743, 0.0
        %v1145 = vmax.f32 %v745, 0.0
        %v1146 = vmax.f32 %v796, 0.0
        %v1147 = vmax.f32 %v798, 0.0
        %v1148 = vmax.f32 %v849, 0.0
        %v1149 = vmax.f32 %v851, 0.0
        %v1150 = vmax.f32 %v902, 0.0
        %v1151 = vmax.f32 %v904, 0.0
        %v1152 = vmax.f32 %v955, 0.0
        %v1153 = vmax.f32 %v957, 0.0
        %v1154 = vmax.f32 %v1008, 0.0
        %v1155 = vmax.f32 %v1010, 0.0
        %v1156 = vmax.f32 %v1061, 0.0
        %v1157 = vmax.f32 %v1063, 0.0
        %v1158 = vmax.f32 %v1114, 0.0
        %v1159 = vmax.f32 %v1116, 0.0
        %v1160 = vmax.f32 %v749, 0.0
        %v1161 = vmax.f32 %v751, 0.0
        %v1162 = vmax.f32 %v802, 0.0
        %v1163 = vmax.f32 %v804, 0.0
        %v1164 = vmax.f32 %v855, 0.0
        %v1165 = vmax.f32 %v857, 0.0
        %v1166 = vmax.f32 %v908, 0.0
        %v1167 = vmax.f32 %v910, 0.0
        %v1168 = vmax.f32 %v961, 0.0
        %v1169 = vmax.f32 %v963, 0.0
        %v1170 = vmax.f32 %v1014, 0.0
        %v1171 = vmax.f32 %v1016, 0.0
        %v1172 = vmax.f32 %v1067, 0.0
        %v1173 = vmax.f32 %v1069, 0.0
        %v1174 = vmax.f32 %v1120, 0.0
        %v1175 = vmax.f32 %v1122, 0.0
        %v1176 = vmax.f32 %v753, 0.0
        %v1177 = vmax.f32 %v755, 0.0
        %v1178 = vmax.f32 %v806, 0.0
        %v1179 = vmax.f32 %v808, 0.0
        %v1180 = vmax.f32 %v859, 0.0
        %v1181 = vmax.f32 %v861, 0.0
        %v1182 = vmax.f32 %v912, 0.0
        %v1183 = vmax.f32 %v914, 0.0
        %v1184 = vmax.f32 %v965, 0.0
        %v1185 = vmax.f32 %v967, 0.0
        %v1186 = vmax.f32 %v1018, 0.0
        %v1187 = vmax.f32 %v1020, 0.0
        %v1188 = vmax.f32 %v1071, 0.0
        %v1189 = vmax.f32 %v1073, 0.0
        %v1190 = vmax.f32 %v1124, 0.0
        %v1191 = vmax.f32 %v1126, 0.0
        %v1192 = vld [vmem:[%s5] sm:$0xff]
        %v1193 = vld [vmem:[%s5 + $0x8] sm:$0xff]
        %v1194 = vld [vmem:[%s5 + $0x10] sm:$0xff]
        %v1195 = vld [vmem:[%s5 + $0x18] sm:$0xff]
        %1197 = vset.pattern.permute.xlu0 0
        %1198 = vperm.xlu0 %1197, %v1192
        %v1199 = vpop.permute.xlu0 %1198
        %1202 = vset.pattern.permute.xlu0 0
        %1203 = vperm.xlu0 %1202, %v1193
        %v1204 = vpop.permute.xlu0 %1203
        %1207 = vset.pattern.permute.xlu0 0
        %1208 = vperm.xlu0 %1207, %v1194
        %v1209 = vpop.permute.xlu0 %1208
        %1212 = vset.pattern.permute.xlu0 0
        %1213 = vperm.xlu0 %1212, %v1195
        %v1214 = vpop.permute.xlu0 %1213
        %v1216 = vmul.f32 %v1199, %v1128
        %v1217 = vmul.f32 %v1199, %v1129
        %v1218 = vmul.f32 %v1199, %v1130
        %v1219 = vmul.f32 %v1199, %v1131
        %v1220 = vmul.f32 %v1199, %v1132
        %v1221 = vmul.f32 %v1199, %v1133
        %v1222 = vmul.f32 %v1199, %v1134
        %v1223 = vmul.f32 %v1199, %v1135
        %v1224 = vmul.f32 %v1199, %v1136
        %v1225 = vmul.f32 %v1199, %v1137
        %v1226 = vmul.f32 %v1199, %v1138
        %v1227 = vmul.f32 %v1199, %v1139
        %v1228 = vmul.f32 %v1199, %v1140
        %v1229 = vmul.f32 %v1199, %v1141
        %v1230 = vmul.f32 %v1199, %v1142
        %v1231 = vmul.f32 %v1199, %v1143
        %v1232 = vmul.f32 %v1204, %v1144
        %v1233 = vmul.f32 %v1204, %v1145
        %v1234 = vmul.f32 %v1204, %v1146
        %v1235 = vmul.f32 %v1204, %v1147
        %v1236 = vmul.f32 %v1204, %v1148
        %v1237 = vmul.f32 %v1204, %v1149
        %v1238 = vmul.f32 %v1204, %v1150
        %v1239 = vmul.f32 %v1204, %v1151
        %v1240 = vmul.f32 %v1204, %v1152
        %v1241 = vmul.f32 %v1204, %v1153
        %v1242 = vmul.f32 %v1204, %v1154
        %v1243 = vmul.f32 %v1204, %v1155
        %v1244 = vmul.f32 %v1204, %v1156
        %v1245 = vmul.f32 %v1204, %v1157
        %v1246 = vmul.f32 %v1204, %v1158
        %v1247 = vmul.f32 %v1204, %v1159
        %v1248 = vmul.f32 %v1209, %v1160
        %v1249 = vmul.f32 %v1209, %v1161
        %v1250 = vmul.f32 %v1209, %v1162
        %v1251 = vmul.f32 %v1209, %v1163
        %v1252 = vmul.f32 %v1209, %v1164
        %v1253 = vmul.f32 %v1209, %v1165
        %v1254 = vmul.f32 %v1209, %v1166
        %v1255 = vmul.f32 %v1209, %v1167
        %v1256 = vmul.f32 %v1209, %v1168
        %v1257 = vmul.f32 %v1209, %v1169
        %v1258 = vmul.f32 %v1209, %v1170
        %v1259 = vmul.f32 %v1209, %v1171
        %v1260 = vmul.f32 %v1209, %v1172
        %v1261 = vmul.f32 %v1209, %v1173
        %v1262 = vmul.f32 %v1209, %v1174
        %v1263 = vmul.f32 %v1209, %v1175
        %v1264 = vmul.f32 %v1214, %v1176
        %v1265 = vmul.f32 %v1214, %v1177
        %v1266 = vmul.f32 %v1214, %v1178
        %v1267 = vmul.f32 %v1214, %v1179
        %v1268 = vmul.f32 %v1214, %v1180
        %v1269 = vmul.f32 %v1214, %v1181
        %v1270 = vmul.f32 %v1214, %v1182
        %v1271 = vmul.f32 %v1214, %v1183
        %v1272 = vmul.f32 %v1214, %v1184
        %v1273 = vmul.f32 %v1214, %v1185
        %v1274 = vmul.f32 %v1214, %v1186
        %v1275 = vmul.f32 %v1214, %v1187
        %v1276 = vmul.f32 %v1214, %v1188
        %v1277 = vmul.f32 %v1214, %v1189
        %v1278 = vmul.f32 %v1214, %v1190
        %v1279 = vmul.f32 %v1214, %v1191
        %v1280 = vadd.f32 %v1216, %v1232
        %v1281 = vadd.f32 %v1280, %v1248
        %v1282 = vadd.f32 %v1281, %v1264
        %v1283 = vrot.slane %v1282, 4
        %v1284 = vadd.f32 %v1282, %v1283
        %v1285 = vrot.slane %v1284, 2
        %v1286 = vadd.f32 %v1284, %v1285
        %v1287 = vrot.slane %v1286, 1
        %v1288 = vadd.f32 %v1286, %v1287
        %v1289 = vadd.f32 %v1217, %v1233
        %v1290 = vadd.f32 %v1289, %v1249
        %v1291 = vadd.f32 %v1290, %v1265
        %v1292 = vrot.slane %v1291, 4
        %v1293 = vadd.f32 %v1291, %v1292
        %v1294 = vrot.slane %v1293, 2
        %v1295 = vadd.f32 %v1293, %v1294
        %v1296 = vrot.slane %v1295, 1
        %v1297 = vadd.f32 %v1295, %v1296
        %v1298 = vadd.f32 %v1218, %v1234
        %v1299 = vadd.f32 %v1298, %v1250
        %v1300 = vadd.f32 %v1299, %v1266
        %v1301 = vrot.slane %v1300, 4
        %v1302 = vadd.f32 %v1300, %v1301
        %v1303 = vrot.slane %v1302, 2
        %v1304 = vadd.f32 %v1302, %v1303
        %v1305 = vrot.slane %v1304, 1
        %v1306 = vadd.f32 %v1304, %v1305
        %v1307 = vadd.f32 %v1219, %v1235
        %v1308 = vadd.f32 %v1307, %v1251
        %v1309 = vadd.f32 %v1308, %v1267
        %v1310 = vrot.slane %v1309, 4
        %v1311 = vadd.f32 %v1309, %v1310
        %v1312 = vrot.slane %v1311, 2
        %v1313 = vadd.f32 %v1311, %v1312
        %v1314 = vrot.slane %v1313, 1
        %v1315 = vadd.f32 %v1313, %v1314
        %v1316 = vadd.f32 %v1220, %v1236
        %v1317 = vadd.f32 %v1316, %v1252
        %v1318 = vadd.f32 %v1317, %v1268
        %v1319 = vrot.slane %v1318, 4
        %v1320 = vadd.f32 %v1318, %v1319
        %v1321 = vrot.slane %v1320, 2
        %v1322 = vadd.f32 %v1320, %v1321
        %v1323 = vrot.slane %v1322, 1
        %v1324 = vadd.f32 %v1322, %v1323
        %v1325 = vadd.f32 %v1221, %v1237
        %v1326 = vadd.f32 %v1325, %v1253
        %v1327 = vadd.f32 %v1326, %v1269
        %v1328 = vrot.slane %v1327, 4
        %v1329 = vadd.f32 %v1327, %v1328
        %v1330 = vrot.slane %v1329, 2
        %v1331 = vadd.f32 %v1329, %v1330
        %v1332 = vrot.slane %v1331, 1
        %v1333 = vadd.f32 %v1331, %v1332
        %v1334 = vadd.f32 %v1222, %v1238
        %v1335 = vadd.f32 %v1334, %v1254
        %v1336 = vadd.f32 %v1335, %v1270
        %v1337 = vrot.slane %v1336, 4
        %v1338 = vadd.f32 %v1336, %v1337
        %v1339 = vrot.slane %v1338, 2
        %v1340 = vadd.f32 %v1338, %v1339
        %v1341 = vrot.slane %v1340, 1
        %v1342 = vadd.f32 %v1340, %v1341
        %v1343 = vadd.f32 %v1223, %v1239
        %v1344 = vadd.f32 %v1343, %v1255
        %v1345 = vadd.f32 %v1344, %v1271
        %v1346 = vrot.slane %v1345, 4
        %v1347 = vadd.f32 %v1345, %v1346
        %v1348 = vrot.slane %v1347, 2
        %v1349 = vadd.f32 %v1347, %v1348
        %v1350 = vrot.slane %v1349, 1
        %v1351 = vadd.f32 %v1349, %v1350
        %v1352 = vadd.f32 %v1224, %v1240
        %v1353 = vadd.f32 %v1352, %v1256
        %v1354 = vadd.f32 %v1353, %v1272
        %v1355 = vrot.slane %v1354, 4
        %v1356 = vadd.f32 %v1354, %v1355
        %v1357 = vrot.slane %v1356, 2
        %v1358 = vadd.f32 %v1356, %v1357
        %v1359 = vrot.slane %v1358, 1
        %v1360 = vadd.f32 %v1358, %v1359
        %v1361 = vadd.f32 %v1225, %v1241
        %v1362 = vadd.f32 %v1361, %v1257
        %v1363 = vadd.f32 %v1362, %v1273
        %v1364 = vrot.slane %v1363, 4
        %v1365 = vadd.f32 %v1363, %v1364
        %v1366 = vrot.slane %v1365, 2
        %v1367 = vadd.f32 %v1365, %v1366
        %v1368 = vrot.slane %v1367, 1
        %v1369 = vadd.f32 %v1367, %v1368
        %v1370 = vadd.f32 %v1226, %v1242
        %v1371 = vadd.f32 %v1370, %v1258
        %v1372 = vadd.f32 %v1371, %v1274
        %v1373 = vrot.slane %v1372, 4
        %v1374 = vadd.f32 %v1372, %v1373
        %v1375 = vrot.slane %v1374, 2
        %v1376 = vadd.f32 %v1374, %v1375
        %v1377 = vrot.slane %v1376, 1
        %v1378 = vadd.f32 %v1376, %v1377
        %v1379 = vadd.f32 %v1227, %v1243
        %v1380 = vadd.f32 %v1379, %v1259
        %v1381 = vadd.f32 %v1380, %v1275
        %v1382 = vrot.slane %v1381, 4
        %v1383 = vadd.f32 %v1381, %v1382
        %v1384 = vrot.slane %v1383, 2
        %v1385 = vadd.f32 %v1383, %v1384
        %v1386 = vrot.slane %v1385, 1
        %v1387 = vadd.f32 %v1385, %v1386
        %v1388 = vadd.f32 %v1228, %v1244
        %v1389 = vadd.f32 %v1388, %v1260
        %v1390 = vadd.f32 %v1389, %v1276
        %v1391 = vrot.slane %v1390, 4
        %v1392 = vadd.f32 %v1390, %v1391
        %v1393 = vrot.slane %v1392, 2
        %v1394 = vadd.f32 %v1392, %v1393
        %v1395 = vrot.slane %v1394, 1
        %v1396 = vadd.f32 %v1394, %v1395
        %v1397 = vadd.f32 %v1229, %v1245
        %v1398 = vadd.f32 %v1397, %v1261
        %v1399 = vadd.f32 %v1398, %v1277
        %v1400 = vrot.slane %v1399, 4
        %v1401 = vadd.f32 %v1399, %v1400
        %v1402 = vrot.slane %v1401, 2
        %v1403 = vadd.f32 %v1401, %v1402
        %v1404 = vrot.slane %v1403, 1
        %v1405 = vadd.f32 %v1403, %v1404
        %v1406 = vadd.f32 %v1230, %v1246
        %v1407 = vadd.f32 %v1406, %v1262
        %v1408 = vadd.f32 %v1407, %v1278
        %v1409 = vrot.slane %v1408, 4
        %v1410 = vadd.f32 %v1408, %v1409
        %v1411 = vrot.slane %v1410, 2
        %v1412 = vadd.f32 %v1410, %v1411
        %v1413 = vrot.slane %v1412, 1
        %v1414 = vadd.f32 %v1412, %v1413
        %v1415 = vadd.f32 %v1231, %v1247
        %v1416 = vadd.f32 %v1415, %v1263
        %v1417 = vadd.f32 %v1416, %v1279
        %v1418 = vrot.slane %v1417, 4
        %v1419 = vadd.f32 %v1417, %v1418
        %v1420 = vrot.slane %v1419, 2
        %v1421 = vadd.f32 %v1419, %v1420
        %v1422 = vrot.slane %v1421, 1
        %v1423 = vadd.f32 %v1421, %v1422
        %s1424 = sld [smem:[#allocation2]]
        %v1425 = vstv %s1424
        %v1426 = vadd.f32 %v1288, %v1425
        %v1427 = vadd.f32 %v1297, %v1425
        %v1428 = vadd.f32 %v1306, %v1425
        %v1429 = vadd.f32 %v1315, %v1425
        %v1430 = vadd.f32 %v1324, %v1425
        %v1431 = vadd.f32 %v1333, %v1425
        %v1432 = vadd.f32 %v1342, %v1425
        %v1433 = vadd.f32 %v1351, %v1425
        %v1434 = vadd.f32 %v1360, %v1425
        %v1435 = vadd.f32 %v1369, %v1425
        %v1436 = vadd.f32 %v1378, %v1425
        %v1437 = vadd.f32 %v1387, %v1425
        %v1438 = vadd.f32 %v1396, %v1425
        %v1439 = vadd.f32 %v1405, %v1425
        %v1440 = vadd.f32 %v1414, %v1425
        %v1441 = vadd.f32 %v1423, %v1425
        %v1458 = vcombine.low %v1426, %v1427
        %v1459 = vcombine.low %v1428, %v1429
        %v1460 = vcombine.low %v1430, %v1431
        %v1461 = vcombine.low %v1432, %v1433
        %v1463 = vunpack.c.l.s4 1966171168
        %v1464 = vunpack.c.0.s8 %v1463
        %v1465 = vlaneseq
        %v1466 = vshrl.u32 %v1465, 7
        %v1467 = vsub.s32 %v1464, %v1466
        %v1468 = vrot.slane %v1458, %v1467
        %v1470 = vunpack.c.l.s4 1966171168
        %v1471 = vunpack.c.0.s8 %v1470
        %v1472 = vlaneseq
        %v1473 = vshrl.u32 %v1472, 7
        %v1474 = vsub.s32 %v1471, %v1473
        %v1475 = vrot.slane %v1459, %v1474
        %v1477 = vunpack.c.l.s4 1966171168
        %v1478 = vunpack.c.0.s8 %v1477
        %v1479 = vlaneseq
        %v1480 = vshrl.u32 %v1479, 7
        %v1481 = vsub.s32 %v1478, %v1480
        %v1482 = vrot.slane %v1460, %v1481
        %v1484 = vunpack.c.l.s4 1966171168
        %v1485 = vunpack.c.0.s8 %v1484
        %v1486 = vlaneseq
        %v1487 = vshrl.u32 %v1486, 7
        %v1488 = vsub.s32 %v1485, %v1487
        %v1489 = vrot.slane %v1461, %v1488
        %v1490 = vcombine.low %v1468, %v1475
        %v1491 = vcombine.low %v1482, %v1489
        %v1493 = vunpack.c.l.s4 1966171168
        %v1494 = vunpack.c.0.s8 %v1493
        %v1495 = vlaneseq
        %v1496 = vshrl.u32 %v1495, 7
        %v1497 = vsub.s32 %v1494, %v1496
        %v1498 = vrot.slane %v1490, %v1497
        %v1500 = vunpack.c.l.s4 1966171168
        %v1501 = vunpack.c.0.s8 %v1500
        %v1502 = vlaneseq
        %v1503 = vshrl.u32 %v1502, 7
        %v1504 = vsub.s32 %v1501, %v1503
        %v1505 = vrot.slane %v1491, %v1504
        %v1506 = vcombine.low %v1498, %v1505
        %v1507 = vcombine.low %v1434, %v1435
        %v1508 = vcombine.low %v1436, %v1437
        %v1509 = vcombine.low %v1438, %v1439
        %v1510 = vcombine.low %v1440, %v1441
        %v1512 = vunpack.c.l.s4 1966171168
        %v1513 = vunpack.c.0.s8 %v1512
        %v1514 = vlaneseq
        %v1515 = vshrl.u32 %v1514, 7
        %v1516 = vsub.s32 %v1513, %v1515
        %v1517 = vrot.slane %v1507, %v1516
        %v1519 = vunpack.c.l.s4 1966171168
        %v1520 = vunpack.c.0.s8 %v1519
        %v1521 = vlaneseq
        %v1522 = vshrl.u32 %v1521, 7
        %v1523 = vsub.s32 %v1520, %v1522
        %v1524 = vrot.slane %v1508, %v1523
        %v1526 = vunpack.c.l.s4 1966171168
        %v1527 = vunpack.c.0.s8 %v1526
        %v1528 = vlaneseq
        %v1529 = vshrl.u32 %v1528, 7
        %v1530 = vsub.s32 %v1527, %v1529
        %v1531 = vrot.slane %v1509, %v1530
        %v1533 = vunpack.c.l.s4 1966171168
        %v1534 = vunpack.c.0.s8 %v1533
        %v1535 = vlaneseq
        %v1536 = vshrl.u32 %v1535, 7
        %v1537 = vsub.s32 %v1534, %v1536
        %v1538 = vrot.slane %v1510, %v1537
        %v1539 = vcombine.low %v1517, %v1524
        %v1540 = vcombine.low %v1531, %v1538
        %v1542 = vunpack.c.l.s4 1966171168
        %v1543 = vunpack.c.0.s8 %v1542
        %v1544 = vlaneseq
        %v1545 = vshrl.u32 %v1544, 7
        %v1546 = vsub.s32 %v1543, %v1545
        %v1547 = vrot.slane %v1539, %v1546
        %v1549 = vunpack.c.l.s4 1966171168
        %v1550 = vunpack.c.0.s8 %v1549
        %v1551 = vlaneseq
        %v1552 = vshrl.u32 %v1551, 7
        %v1553 = vsub.s32 %v1550, %v1552
        %v1554 = vrot.slane %v1540, %v1553
        %v1555 = vcombine.low %v1547, %v1554
        %1558 = vst [vmem:[%s283] sm:$0xff] %v1506
        %1559 = vst [vmem:[%s283 + $0x8] sm:$0xff] %v1555
        %s1560 = sand.u32 %s182, 1
        %s1561 = scalar_lea.sflag [#allocation4], %s1560
        %s1562 = sand.u32 %s182, 1
        %s1563 = smul.addr %s1562, 16
        %s1564 = scalar_lea.vmem [#allocation3], %s1563
        // Predicated region
        $region49: #{tpu_custom_call.1} parent=47 // pred_check
          %p1565 = pneg %p192
        $region50: #{tpu_custom_call.1} parent=47 // pred_check_branch
          %1567 = sbr.rel (%p1565) target = $region52
        $region51: #{tpu_custom_call.1} parent=47 // pred_region
          %s1568 = smul.u32 16, %s22
          %s1569 = ssub.s32 40, %s1568
          %p1570 = scmp.lt.s32.totalorder %s1569, 16
          %s1571 = scalar_select %p1570, %s1569, 16
          %s1572 = smul.u32 16, %s1571
          %s1574 = ssub.s32 256, %s1572
          %1575 = vsyncadd %s1561, %s1574
          %p1576 = scmp.ne.s32.totalorder 0, %s1572
          %s1577 = smul.addr %s1568, 16
          %s1578 = scalar_lea.hbm %s7, %s1577
          %s1579 = sshll.u32 %s1571, 4
          %s1580 = sshll.u32 %s1564, 4
          %s1581 = int_to_ptr.vmem [resolvable:$true] %s1580
          %1583 = dma.vmem_to_hbm [thread:$0]  (%p1576), %s1581, %s1579, %s1578, %s1561
        $region52: #{tpu_custom_call.1} parent=47 // pred_fallthru
          _
      $region48: #{tpu_custom_call.1} parent=5 // pred_fallthru
        _
      %p1584 = scmp.le.s32.totalorder 2, %s17
      // Predicated region
      $region53: #{tpu_custom_call.1} parent=5 // pred_check
        %p1585 = pneg %p1584
      $region54: #{tpu_custom_call.1} parent=5 // pred_check_branch
        %1587 = sbr.rel (%p1585) target = $region56
      $region55: #{tpu_custom_call.1} parent=5 // pred_region
        %s1588 = ssub.s32 %s17, 2
        // Predicated region
        $region57: #{tpu_custom_call.1} parent=55 // pred_check
          %p1589 = pneg %p198
        $region58: #{tpu_custom_call.1} parent=55 // pred_check_branch
          %1591 = sbr.rel (%p1589) target = $region60
        $region59: #{tpu_custom_call.1} parent=55 // pred_region
          %s1592 = sand.u32 %s183, 1
          %s1593 = scalar_lea.sflag [#allocation4], %s1592
          %s1594 = sand.u32 %s183, 1
          %s1595 = smul.addr %s1594, 16
          %s1596 = scalar_lea.vmem [#allocation3], %s1595
          %1597 = dma.done %s1593, 256
        $region60: #{tpu_custom_call.1} parent=55 // pred_fallthru
          _
      $region56: #{tpu_custom_call.1} parent=5 // pred_fallthru
        _
    $region6: #{tpu_custom_call.1} parent=1 // loop_footer
      %s21 = sadd.s32 1, %s17
    $region7: #{tpu_custom_call.1} parent=1 // loop_footer_branch
      %16 = sbr.rel target = $region3
    $region8: #{tpu_custom_call.1} parent=1 // loop_exit
      _
    %1598 = vsyncpa [#allocation4], 1
    %s1599 = scalar_lea.sflag [#allocation4], 1
    %1600 = vsyncpa %s1599, 1

</llo_original>
